<compile_context>
chip_gen: v7x
topology: tpu7x:2x2x1
jax: 0.10.0
libtpu: 0.0.40
codegen_flags: <defaults>
</compile_context>

<pallas_src>
import jax
import jax.numpy as jnp
from jax.experimental import pallas as pl
from jax.experimental.pallas import tpu as pltpu


# ----------------------------------------------------------------------------
# Helpers
# ----------------------------------------------------------------------------

def _round_up(x, m):
    return ((x + m - 1) // m) * m


def _repack_ifgo_to_ifog(w, H):
    """Permute PyTorch gate columns [i, f, g, o] -> [i, f, o, g] (last axis)."""
    return jnp.concatenate(
        [w[..., 0 * H:1 * H], w[..., 1 * H:2 * H],
         w[..., 3 * H:4 * H], w[..., 2 * H:3 * H]], axis=-1)


def _vmem_limit_bytes(chunk, batch_p, H, O, emit_seq):
    """Estimate VMEM needed (double-buffered inputs + outputs + scratch)."""
    f = 4
    lane = lambda n: _round_up(max(n, 1), 128)
    sub = lambda n: _round_up(max(n, 1), 8)
    est = 0
    est += 2 * sub(chunk * batch_p) * lane(4 * H) * f      # gx block (x2 bufs)
    est += 2 * sub(H) * lane(4 * H) * f                    # w_hh
    est += 2 * sub(H) * lane(O) * f                        # w_fc
    est += 2 * sub(1) * lane(O) * f                        # b_fc
    if emit_seq:
        est += 2 * sub(chunk * batch_p) * lane(H) * f      # out_seq block
    est += 2 * sub(batch_p) * lane(O) * f                  # out block
    est += 2 * sub(batch_p) * lane(H) * f                  # h, c scratch
    est += 4 << 20                                         # compiler headroom
    # Keep well under v7x's 64 MiB physical VMEM.
    return int(min(max(est, 16 << 20), 48 << 20))


# ----------------------------------------------------------------------------
# LSTM layer kernel (recurrence + fused fc/ReLU on the last chunk)
# ----------------------------------------------------------------------------

def _make_lstm_kernel(seq, chunk, batch_p, H, emit_seq, mask_tail):
    """Build a kernel for one LSTM layer processed in seq-chunks over the grid.

    Inputs : gx (chunk*batch_p, 4H)   precomputed x@W_ih + b, gates [i,f,o,g]
             w_hh (H, 4H), w_fc (H, O), b_fc (1, O)
    Outputs: [out_seq (chunk*batch_p, H) if emit_seq], out (batch_p, O)
    Scratch: h, c (batch_p, H)  -- persist across grid steps.
    """

    def kernel(gx_ref, w_hh_ref, w_fc_ref, b_fc_ref, *rest):
        if emit_seq:
            out_seq_ref, out_ref, h_sc, c_sc = rest
        else:
            out_ref, h_sc, c_sc = rest
        cidx = pl.program_id(0)

        @pl.when(cidx == 0)
        def _():
            h_sc[...] = jnp.zeros_like(h_sc)
            c_sc[...] = jnp.zeros_like(c_sc)

        # Hoist the recurrent weight load out of the serial step loop.
        w_hh = w_hh_ref[...]
        if mask_tail:
            valid_steps = jnp.minimum(seq - cidx * chunk, chunk)

        def step(t, carry):
            h = h_sc[...]
            c = c_sc[...]
            row = t * batch_p
            if not isinstance(row, int):
                row = pl.multiple_of(row, batch_p)
            # Only the recurrent matmul sits on the serial critical path.
            gates = gx_ref[pl.ds(row, batch_p), :] + jnp.dot(
                h, w_hh, preferred_element_type=jnp.float32)
            # Gate columns are pre-packed [i, f, o, g]: one sigmoid slab + one
            # tanh. With H a multiple of 128 all slices are lane-aligned.
            s = jax.nn.sigmoid(gates[:, :3 * H])
            g_g = jnp.tanh(gates[:, 3 * H:])
            i_g = s[:, 0 * H:1 * H]
            f_g = s[:, 1 * H:2 * H]
            o_g = s[:, 2 * H:3 * H]
            c_new = f_g * c + i_g * g_g
            h_new = o_g * jnp.tanh(c_new)
            if mask_tail:
                keep = t < valid_steps
                h_new = jnp.where(keep, h_new, h)
                c_new = jnp.where(keep, c_new, c)
            h_sc[...] = h_new
            c_sc[...] = c_new
            if emit_seq:
                out_seq_ref[pl.ds(row, batch_p), :] = h_new
            return carry

        unroll = True if chunk <= 32 else 8
        jax.lax.fori_loop(0, chunk, step, 0, unroll=unroll)

        @pl.when(cidx == pl.num_programs(0) - 1)
        def _():
            y = jnp.dot(h_sc[...], w_fc_ref[...],
                        preferred_element_type=jnp.float32) + b_fc_ref[...]
            out_ref[...] = jnp.maximum(y, 0.0)

    return kernel


# ----------------------------------------------------------------------------
# LSTMEncoder wrapper
# ----------------------------------------------------------------------------

def lstm_encoder_forward(Xt, enc_params, *, max_chunk=128):
    """Xt: (5, batch, seq) float32 -> relu(fc(hn)) matching PyTorch LSTMEncoder."""
    x = jnp.transpose(Xt, (2, 1, 0)).astype(jnp.float32)   # (seq, batch, 5)
    seq, batch, _ = x.shape
    layers = enc_params["lstm_layers"]
    w_fc_t, b_fc = enc_params["fc"]
    O = w_fc_t.shape[1]
    L = len(layers)

    batch_p = _round_up(batch, 8)            # f32 sublane alignment
    chunk = min(seq, max_chunk)              # VMEM bounded regardless of seq
    num_chunks = -(-seq // chunk)
    padded_seq = num_chunks * chunk
    mask_tail = padded_seq != seq

    # Pad batch and seq tail; flatten to a lane/sublane-dense 2-D slab.
    if batch_p != batch:
        x = jnp.pad(x, ((0, 0), (0, batch_p - batch), (0, 0)))
    layer_in = x.reshape(seq * batch_p, x.shape[2])
    if mask_tail:
        layer_in = jnp.pad(layer_in, ((0, (padded_seq - seq) * batch_p), (0, 0)))

    outs = []
    for l, (w_ih_t, w_hh_t, b) in enumerate(layers):
        H = w_hh_t.shape[0]
        # One-time gate repack [i,f,g,o] -> [i,f,o,g] (outside the kernel).
        w_ih_r = _repack_ifgo_to_ifog(w_ih_t, H)
        w_hh_r = _repack_ifgo_to_ifog(w_hh_t, H)
        b_r = _repack_ifgo_to_ifog(b, H)
        # Hoisted input projection + fused bias: off the serial recurrence.
        gx = jnp.dot(layer_in, w_ih_r, preferred_element_type=jnp.float32) + b_r

        emit_seq = l < L - 1
        kernel = _make_lstm_kernel(seq, chunk, batch_p, H, emit_seq, mask_tail)

        in_specs = [
            pl.BlockSpec((chunk * batch_p, 4 * H), lambda c: (c, 0)),   # gx slab
            pl.BlockSpec((H, 4 * H), lambda c: (0, 0)),                 # w_hh
            pl.BlockSpec((H, O), lambda c: (0, 0)),                     # w_fc
            pl.BlockSpec((1, O), lambda c: (0, 0)),                     # b_fc
        ]
        if emit_seq:
            out_shape = (jax.ShapeDtypeStruct((padded_seq * batch_p, H), jnp.float32),
                         jax.ShapeDtypeStruct((batch_p, O), jnp.float32))
            out_specs = (pl.BlockSpec((chunk * batch_p, H), lambda c: (c, 0)),
                         pl.BlockSpec((batch_p, O), lambda c: (0, 0)))
        else:
            out_shape = jax.ShapeDtypeStruct((batch_p, O), jnp.float32)
            out_specs = pl.BlockSpec((batch_p, O), lambda c: (0, 0))

        result = pl.pallas_call(
            kernel,
            out_shape=out_shape,
            grid=(num_chunks,),
            in_specs=in_specs,
            out_specs=out_specs,
            scratch_shapes=[pltpu.VMEM((batch_p, H), jnp.float32),   # h
                            pltpu.VMEM((batch_p, H), jnp.float32)],  # c
            compiler_params=pltpu.CompilerParams(
                dimension_semantics=("arbitrary",),
                vmem_limit_bytes=_vmem_limit_bytes(chunk, batch_p, H, O, emit_seq)),
        )(gx, w_hh_r, w_fc_t, b_fc)

        if emit_seq:
            layer_in, out_l = result     # out_seq feeds the next layer's gx
        else:
            out_l = result
        outs.append(out_l[:batch])       # strip batch padding

    if L == 1:
        return outs[0]                   # torch .squeeze(0) drops layer axis
    return jnp.stack(outs, axis=0)       # (L, batch, O)


# ----------------------------------------------------------------------------
# Decoder / DNN heads: small fused MLP kernels (fully in VMEM, single shot)
# ----------------------------------------------------------------------------

def _mlp_kernel(n_layers):
    def kernel(*refs):
        x_ref = refs[0]
        out_ref = refs[1 + 2 * n_layers]
        h = x_ref[...]
        for l in range(n_layers):
            w = refs[1 + 2 * l][...]
            b = refs[2 + 2 * l][...]
            h = jnp.dot(h, w, preferred_element_type=jnp.float32) + b
            if l < n_layers - 1:
                h = jnp.maximum(h, 0.0)     # ReLU between layers (not after last)
        out_ref[...] = h
    return kernel


def _mlp_forward(x2d, mlp_params):
    n = len(mlp_params)
    args = [x2d.astype(jnp.float32)]
    for (w, b) in mlp_params:
        args += [w, b]
    out_dim = mlp_params[-1][0].shape[1]
    vmem = pl.BlockSpec(memory_space=pltpu.MemorySpace.VMEM)
    return pl.pallas_call(
        _mlp_kernel(n),
        out_shape=jax.ShapeDtypeStruct((x2d.shape[0], out_dim), jnp.float32),
        in_specs=[vmem] * len(args),
        out_specs=vmem,
    )(*args)


def decoder_forward(hn, dec_params):
    """fc2(relu(fc1(hn))) — PyTorch Decoder."""
    return _mlp_forward(hn, dec_params)


def dnn_forward(hn, wt, dnn_params):
    """fc3(relu(fc2(relu(fc1(cat(hn.view(-1), wt.view(-1))))))) — PyTorch DNN."""
    x = jnp.concatenate([jnp.reshape(hn, (-1,)), jnp.reshape(wt, (-1,))])[None, :]
    return _mlp_forward(x, dnn_params)[0]


def multi_value_lstm_forward(state, params, pretrain, only_LSTM=False, no_LSTM=False):
    """Mirror of MultiValueLSTM.forward."""
    if only_LSTM:
        return lstm_encoder_forward(state["Xt_Matrix"], params["encoder"])
    if no_LSTM:
        return dnn_forward(state["hn"], state["Portfolio_Weight"], params["dnn"])
    hn = lstm_encoder_forward(state["Xt_Matrix"], params["encoder"])
    if pretrain:
        return decoder_forward(hn, params["decoder"])
    return dnn_forward(hn, state["Portfolio_Weight"], params["dnn"])


# ----------------------------------------------------------------------------
# Parameter init (PyTorch-style layout / ordering) + pure-JAX references
# ----------------------------------------------------------------------------

def init_encoder_params(key, input_size, hidden_size, num_layers, output_size):
    """U(-1/sqrt(H), 1/sqrt(H)) init; gates kept in PyTorch [i,f,g,o] order."""
    H = hidden_size
    bound = 1.0 / jnp.sqrt(jnp.float32(H))
    layers = []
    in_dim = input_size
    for _ in range(num_layers):
        key, k1, k2, k3, k4 = jax.random.split(key, 5)
        w_ih = jax.random.uniform(k1, (4 * H, in_dim), jnp.float32, -bound, bound)
        w_hh = jax.random.uniform(k2, (4 * H, H), jnp.float32, -bound, bound)
        b_ih = jax.random.uniform(k3, (4 * H,), jnp.float32, -bound, bound)
        b_hh = jax.random.uniform(k4, (4 * H,), jnp.float32, -bound, bound)
        layers.append((w_ih.T, w_hh.T, (b_ih + b_hh).reshape(1, 4 * H)))
        in_dim = H
    key, k1, k2 = jax.random.split(key, 3)
    w_fc = jax.random.uniform(k1, (output_size, H), jnp.float32, -bound, bound)
    b_fc = jax.random.uniform(k2, (output_size,), jnp.float32, -bound, bound)
    return {"lstm_layers": layers, "fc": (w_fc.T, b_fc.reshape(1, output_size))}


def init_mlp_params(key, sizes):
    params = []
    for fan_in, fan_out in zip(sizes[:-1], sizes[1:]):
        key, kw, kb = jax.random.split(key, 3)
        bound = 1.0 / jnp.sqrt(jnp.float32(fan_in))
        w = jax.random.uniform(kw, (fan_in, fan_out), jnp.float32, -bound, bound)
        b = jax.random.uniform(kb, (fan_out,), jnp.float32, -bound, bound)
        params.append((w, b.reshape(1, fan_out)))
    return params


def _reference_encoder(Xt, enc_params):
    x = jnp.transpose(Xt, (2, 1, 0)).astype(jnp.float32)
    hns = []
    for (w_ih_t, w_hh_t, b) in enc_params["lstm_layers"]:
        H = w_hh_t.shape[0]
        batch = x.shape[1]
        h0 = jnp.zeros((batch, H), jnp.float32)
        c0 = jnp.zeros((batch, H), jnp.float32)

        def step(carry, x_t):
            h, c = carry
            gates = (jnp.dot(x_t, w_ih_t) + jnp.dot(h, w_hh_t) + b)
            i_g = jax.nn.sigmoid(gates[:, 0 * H:1 * H])
            f_g = jax.nn.sigmoid(gates[:, 1 * H:2 * H])
            g_g = jnp.tanh(gates[:, 2 * H:3 * H])
            o_g = jax.nn.sigmoid(gates[:, 3 * H:4 * H])
            c_new = f_g * c + i_g * g_g
            h_new = o_g * jnp.tanh(c_new)
            return (h_new, c_new), h_new

        (hT, _), out_seq = jax.lax.scan(step, (h0, c0), x)
        x = out_seq
        hns.append(hT)
    hn_all = jnp.stack(hns, axis=0)
    w_fc_t, b_fc = enc_params["fc"]
    out = jnp.maximum(hn_all @ w_fc_t + b_fc, 0.0)
    return out[0] if out.shape[0] == 1 else out


def _reference_mlp(x, params):
    h = x
    for i, (w, b) in enumerate(params):
        h = h @ w + b
        if i < len(params) - 1:
            h = jnp.maximum(h, 0.0)
    return h


# ----------------------------------------------------------------------------
# Demo / self-check
# ----------------------------------------------------------------------------

if __name__ == "__main__":
    INPUT_SIZE = 5
    ASSET_NUM = 2               # batch dimension of Xt
    SEQ = 8
    LSTM_HIDDEN_SIZE = 128      # module default (lane-aligned gates)
    LSTM_LAYERS = 1             # module default
    LSTM_OUTPUT_SIZE = 20       # module default
    DNN_H1, DNN_H2 = 64, 32     # module defaults
    DECODER_HIDDEN = 64         # module default

    key = jax.random.PRNGKey(0)
    key, kx, kw, kp, kd, kn = jax.random.split(key, 6)
    Xt = jax.random.normal(kx, (INPUT_SIZE, ASSET_NUM, SEQ), jnp.float32)
    wt = jax.random.uniform(kw, (ASSET_NUM + 1,), jnp.float32)

    params = {
        "encoder": init_encoder_params(kp, INPUT_SIZE, LSTM_HIDDEN_SIZE,
                                       LSTM_LAYERS, LSTM_OUTPUT_SIZE),
        "decoder": init_mlp_params(kd, [LSTM_OUTPUT_SIZE, DECODER_HIDDEN, 5]),
        "dnn": init_mlp_params(
            kn, [LSTM_OUTPUT_SIZE * ASSET_NUM + ASSET_NUM + 1,
                 DNN_H1, DNN_H2, 3 ** ASSET_NUM]),
    }
    state = {"Xt_Matrix": Xt, "Portfolio_Weight": wt}

    # only_LSTM path (encoder)
    hn = jax.block_until_ready(
        multi_value_lstm_forward(state, params, pretrain=False, only_LSTM=True))
    hn_ref = _reference_encoder(Xt, params["encoder"])
    assert hn.shape == (ASSET_NUM, LSTM_OUTPUT_SIZE), hn.shape
    assert jnp.allclose(hn, hn_ref, atol=1e-4, rtol=1e-4), "encoder mismatch"

    # pretrain path (encoder -> decoder)
    dec = jax.block_until_ready(
        multi_value_lstm_forward(state, params, pretrain=True))
    dec_ref = _reference_mlp(hn_ref, params["decoder"])
    assert dec.shape == (ASSET_NUM, 5), dec.shape
    assert jnp.allclose(dec, dec_ref, atol=1e-4, rtol=1e-4), "decoder mismatch"

    # main path (encoder -> DNN)
    q = jax.block_until_ready(
        multi_value_lstm_forward(state, params, pretrain=False))
    x_cat = jnp.concatenate([hn_ref.reshape(-1), wt.reshape(-1)])[None, :]
    q_ref = _reference_mlp(x_cat, params["dnn"])[0]
    assert q.shape == (3 ** ASSET_NUM,), q.shape
    assert jnp.allclose(q, q_ref, atol=1e-4, rtol=1e-4), "DNN mismatch"

    # Encoder stress path: 2 layers, multi-chunk grid with a masked tail
    # (seq=20, chunk=8 -> 3 chunks, last chunk has 4 valid steps).
    SEQ2, LAYERS2 = 20, 2
    key, kx2, kp2 = jax.random.split(key, 3)
    Xt2 = jax.random.normal(kx2, (INPUT_SIZE, ASSET_NUM, SEQ2), jnp.float32)
    enc2 = init_encoder_params(kp2, INPUT_SIZE, LSTM_HIDDEN_SIZE, LAYERS2,
                               LSTM_OUTPUT_SIZE)
    out2 = jax.block_until_ready(lstm_encoder_forward(Xt2, enc2, max_chunk=8))
    ref2 = _reference_encoder(Xt2, enc2)
    assert out2.shape == (LAYERS2, ASSET_NUM, LSTM_OUTPUT_SIZE), out2.shape
    assert jnp.allclose(out2, ref2, atol=1e-4, rtol=1e-4), "L=2 encoder mismatch"

    print("KERNEL_OK")
</pallas_src>

<mosaic_0001>
module attributes {stable_mosaic.version = 11 : i64} {
  func.func @kernel(%arg0: i32, %arg1: memref<64x512xf32, #tpu.memory_space<vmem>>, %arg2: memref<128x512xf32, #tpu.memory_space<vmem>>, %arg3: memref<128x20xf32, #tpu.memory_space<vmem>>, %arg4: memref<1x20xf32, #tpu.memory_space<vmem>>, %arg5: memref<8x20xf32, #tpu.memory_space<vmem>>, %arg6: memref<8x128xf32, #tpu.memory_space<vmem>>, %arg7: memref<8x128xf32, #tpu.memory_space<vmem>>) attributes {dimension_semantics = [#tpu.dimension_semantics<arbitrary>], iteration_bounds = array<i64: 1>, scalar_prefetch = 0 : i64, scratch_operands = 2 : i64, tpu.core_type = #tpu.core_type<tc>, window_params = [{transform_indices = @transform_0, window_bounds = array<i64: 64, 512>}, {pipeline_mode = #tpu.pipeline_mode<synchronous>, transform_indices = @transform_1, window_bounds = array<i64: 128, 512>}, {pipeline_mode = #tpu.pipeline_mode<synchronous>, transform_indices = @transform_2, window_bounds = array<i64: 128, 20>}, {pipeline_mode = #tpu.pipeline_mode<synchronous>, transform_indices = @transform_3, window_bounds = array<i64: 1, 20>}, {pipeline_mode = #tpu.pipeline_mode<synchronous>, transform_indices = @transform_4, window_bounds = array<i64: 8, 20>}]} {
    %c0_i32 = arith.constant 0 : i32
    %0 = arith.cmpi eq, %arg0, %c0_i32 : i32
    %1 = arith.extui %0 : i1 to i32
    %c0_i32_0 = arith.constant 0 : i32
    %2 = arith.cmpi ne, %1, %c0_i32_0 : i32
    scf.if %2 {
      %cst_100 = arith.constant 0.000000e+00 : f32
      %215 = vector.broadcast %cst_100 : f32 to vector<8x128xf32>
      %c0_101 = arith.constant 0 : index
      %c0_102 = arith.constant 0 : index
      %216 = vector.load %arg6[%c0_101, %c0_102] : memref<8x128xf32, #tpu.memory_space<vmem>>, vector<8x128xf32>
      tpu.vector_store %arg6[%c0_101, %c0_102], %215 {strides = array<i32>} : memref<8x128xf32, #tpu.memory_space<vmem>>, vector<8x128xf32>,
      %cst_103 = arith.constant 0.000000e+00 : f32
      %217 = vector.broadcast %cst_103 : f32 to vector<8x128xf32>
      %c0_104 = arith.constant 0 : index
      %c0_105 = arith.constant 0 : index
      %218 = vector.load %arg7[%c0_104, %c0_105] : memref<8x128xf32, #tpu.memory_space<vmem>>, vector<8x128xf32>
      tpu.vector_store %arg7[%c0_104, %c0_105], %217 {strides = array<i32>} : memref<8x128xf32, #tpu.memory_space<vmem>>, vector<8x128xf32>,
    } else {
    }
    %c0 = arith.constant 0 : index
    %c0_1 = arith.constant 0 : index
    %3 = vector.load %arg2[%c0, %c0_1] : memref<128x512xf32, #tpu.memory_space<vmem>>, vector<128x512xf32>
    %c0_i32_2 = arith.constant 0 : i32
    %c0_3 = arith.constant 0 : index
    %c0_4 = arith.constant 0 : index
    %4 = vector.load %arg6[%c0_3, %c0_4] : memref<8x128xf32, #tpu.memory_space<vmem>>, vector<8x128xf32>
    %c0_5 = arith.constant 0 : index
    %c0_6 = arith.constant 0 : index
    %5 = vector.load %arg7[%c0_5, %c0_6] : memref<8x128xf32, #tpu.memory_space<vmem>>, vector<8x128xf32>
    %c8_i32 = arith.constant 8 : i32
    %6 = arith.muli %c0_i32_2, %c8_i32 : i32
    %7 = tpu.assume_multiple %6, 8 : i32
    %8 = arith.index_cast %7 : i32 to index
    %c0_7 = arith.constant 0 : index
    %9 = vector.load %arg1[%8, %c0_7] : memref<64x512xf32, #tpu.memory_space<vmem>>, vector<8x512xf32>
    %cst = arith.constant dense<0.000000e+00> : vector<8x512xf32>
    %10 = tpu.matmul %4, %3, %cst {dimension_numbers = #tpu.dot_dimension_numbers<[1], [0], [0], [1], [0, 0, 1, 1], [], []>} : vector<8x128xf32>, vector<128x512xf32>, vector<8x512xf32> -> vector<8x512xf32>
    %11 = arith.addf %9, %10 : vector<8x512xf32>
    %12 = vector.extract_strided_slice %11 {offsets = [0, 0], sizes = [8, 384], strides = [1, 1]} : vector<8x512xf32> to vector<8x384xf32>
    %13 = arith.negf %12 : vector<8x384xf32>
    %14 = math.exp %13 : vector<8x384xf32>
    %cst_8 = arith.constant 1.000000e+00 : f32
    %15 = vector.broadcast %cst_8 : f32 to vector<8x384xf32>
    %16 = arith.addf %15, %14 : vector<8x384xf32>
    %17 = arith.divf %15, %16 : vector<8x384xf32>
    %18 = vector.extract_strided_slice %11 {offsets = [0, 384], sizes = [8, 128], strides = [1, 1]} : vector<8x512xf32> to vector<8x128xf32>
    %19 = math.tanh %18 : vector<8x128xf32>
    %20 = vector.extract_strided_slice %17 {offsets = [0, 0], sizes = [8, 128], strides = [1, 1]} : vector<8x384xf32> to vector<8x128xf32>
    %21 = vector.extract_strided_slice %17 {offsets = [0, 128], sizes = [8, 128], strides = [1, 1]} : vector<8x384xf32> to vector<8x128xf32>
    %22 = vector.extract_strided_slice %17 {offsets = [0, 256], sizes = [8, 128], strides = [1, 1]} : vector<8x384xf32> to vector<8x128xf32>
    %23 = arith.mulf %21, %5 : vector<8x128xf32>
    %24 = arith.mulf %20, %19 : vector<8x128xf32>
    %25 = arith.addf %23, %24 : vector<8x128xf32>
    %26 = math.tanh %25 : vector<8x128xf32>
    %27 = arith.mulf %22, %26 : vector<8x128xf32>
    %c0_9 = arith.constant 0 : index
    %c0_10 = arith.constant 0 : index
    %28 = vector.load %arg6[%c0_9, %c0_10] : memref<8x128xf32, #tpu.memory_space<vmem>>, vector<8x128xf32>
    tpu.vector_store %arg6[%c0_9, %c0_10], %27 {strides = array<i32>} : memref<8x128xf32, #tpu.memory_space<vmem>>, vector<8x128xf32>,
    %c0_11 = arith.constant 0 : index
    %c0_12 = arith.constant 0 : index
    %29 = vector.load %arg7[%c0_11, %c0_12] : memref<8x128xf32, #tpu.memory_space<vmem>>, vector<8x128xf32>
    tpu.vector_store %arg7[%c0_11, %c0_12], %25 {strides = array<i32>} : memref<8x128xf32, #tpu.memory_space<vmem>>, vector<8x128xf32>,
    %c1_i32 = arith.constant 1 : i32
    %c0_13 = arith.constant 0 : index
    %c0_14 = arith.constant 0 : index
    %30 = vector.load %arg6[%c0_13, %c0_14] : memref<8x128xf32, #tpu.memory_space<vmem>>, vector<8x128xf32>
    %c0_15 = arith.constant 0 : index
    %c0_16 = arith.constant 0 : index
    %31 = vector.load %arg7[%c0_15, %c0_16] : memref<8x128xf32, #tpu.memory_space<vmem>>, vector<8x128xf32>
    %c8_i32_17 = arith.constant 8 : i32
    %32 = arith.muli %c1_i32, %c8_i32_17 : i32
    %33 = tpu.assume_multiple %32, 8 : i32
    %34 = arith.index_cast %33 : i32 to index
    %c0_18 = arith.constant 0 : index
    %35 = vector.load %arg1[%34, %c0_18] : memref<64x512xf32, #tpu.memory_space<vmem>>, vector<8x512xf32>
    %cst_19 = arith.constant dense<0.000000e+00> : vector<8x512xf32>
    %36 = tpu.matmul %30, %3, %cst_19 {dimension_numbers = #tpu.dot_dimension_numbers<[1], [0], [0], [1], [0, 0, 1, 1], [], []>} : vector<8x128xf32>, vector<128x512xf32>, vector<8x512xf32> -> vector<8x512xf32>
    %37 = arith.addf %35, %36 : vector<8x512xf32>
    %38 = vector.extract_strided_slice %37 {offsets = [0, 0], sizes = [8, 384], strides = [1, 1]} : vector<8x512xf32> to vector<8x384xf32>
    %39 = arith.negf %38 : vector<8x384xf32>
    %40 = math.exp %39 : vector<8x384xf32>
    %cst_20 = arith.constant 1.000000e+00 : f32
    %41 = vector.broadcast %cst_20 : f32 to vector<8x384xf32>
    %42 = arith.addf %41, %40 : vector<8x384xf32>
    %43 = arith.divf %41, %42 : vector<8x384xf32>
    %44 = vector.extract_strided_slice %37 {offsets = [0, 384], sizes = [8, 128], strides = [1, 1]} : vector<8x512xf32> to vector<8x128xf32>
    %45 = math.tanh %44 : vector<8x128xf32>
    %46 = vector.extract_strided_slice %43 {offsets = [0, 0], sizes = [8, 128], strides = [1, 1]} : vector<8x384xf32> to vector<8x128xf32>
    %47 = vector.extract_strided_slice %43 {offsets = [0, 128], sizes = [8, 128], strides = [1, 1]} : vector<8x384xf32> to vector<8x128xf32>
    %48 = vector.extract_strided_slice %43 {offsets = [0, 256], sizes = [8, 128], strides = [1, 1]} : vector<8x384xf32> to vector<8x128xf32>
    %49 = arith.mulf %47, %31 : vector<8x128xf32>
    %50 = arith.mulf %46, %45 : vector<8x128xf32>
    %51 = arith.addf %49, %50 : vector<8x128xf32>
    %52 = math.tanh %51 : vector<8x128xf32>
    %53 = arith.mulf %48, %52 : vector<8x128xf32>
    %c0_21 = arith.constant 0 : index
    %c0_22 = arith.constant 0 : index
    %54 = vector.load %arg6[%c0_21, %c0_22] : memref<8x128xf32, #tpu.memory_space<vmem>>, vector<8x128xf32>
    tpu.vector_store %arg6[%c0_21, %c0_22], %53 {strides = array<i32>} : memref<8x128xf32, #tpu.memory_space<vmem>>, vector<8x128xf32>,
    %c0_23 = arith.constant 0 : index
    %c0_24 = arith.constant 0 : index
    %55 = vector.load %arg7[%c0_23, %c0_24] : memref<8x128xf32, #tpu.memory_space<vmem>>, vector<8x128xf32>
    tpu.vector_store %arg7[%c0_23, %c0_24], %51 {strides = array<i32>} : memref<8x128xf32, #tpu.memory_space<vmem>>, vector<8x128xf32>,
    %c2_i32 = arith.constant 2 : i32
    %c0_25 = arith.constant 0 : index
    %c0_26 = arith.constant 0 : index
    %56 = vector.load %arg6[%c0_25, %c0_26] : memref<8x128xf32, #tpu.memory_space<vmem>>, vector<8x128xf32>
    %c0_27 = arith.constant 0 : index
    %c0_28 = arith.constant 0 : index
    %57 = vector.load %arg7[%c0_27, %c0_28] : memref<8x128xf32, #tpu.memory_space<vmem>>, vector<8x128xf32>
    %c8_i32_29 = arith.constant 8 : i32
    %58 = arith.muli %c2_i32, %c8_i32_29 : i32
    %59 = tpu.assume_multiple %58, 8 : i32
    %60 = arith.index_cast %59 : i32 to index
    %c0_30 = arith.constant 0 : index
    %61 = vector.load %arg1[%60, %c0_30] : memref<64x512xf32, #tpu.memory_space<vmem>>, vector<8x512xf32>
    %cst_31 = arith.constant dense<0.000000e+00> : vector<8x512xf32>
    %62 = tpu.matmul %56, %3, %cst_31 {dimension_numbers = #tpu.dot_dimension_numbers<[1], [0], [0], [1], [0, 0, 1, 1], [], []>} : vector<8x128xf32>, vector<128x512xf32>, vector<8x512xf32> -> vector<8x512xf32>
    %63 = arith.addf %61, %62 : vector<8x512xf32>
    %64 = vector.extract_strided_slice %63 {offsets = [0, 0], sizes = [8, 384], strides = [1, 1]} : vector<8x512xf32> to vector<8x384xf32>
    %65 = arith.negf %64 : vector<8x384xf32>
    %66 = math.exp %65 : vector<8x384xf32>
    %cst_32 = arith.constant 1.000000e+00 : f32
    %67 = vector.broadcast %cst_32 : f32 to vector<8x384xf32>
    %68 = arith.addf %67, %66 : vector<8x384xf32>
    %69 = arith.divf %67, %68 : vector<8x384xf32>
    %70 = vector.extract_strided_slice %63 {offsets = [0, 384], sizes = [8, 128], strides = [1, 1]} : vector<8x512xf32> to vector<8x128xf32>
    %71 = math.tanh %70 : vector<8x128xf32>
    %72 = vector.extract_strided_slice %69 {offsets = [0, 0], sizes = [8, 128], strides = [1, 1]} : vector<8x384xf32> to vector<8x128xf32>
    %73 = vector.extract_strided_slice %69 {offsets = [0, 128], sizes = [8, 128], strides = [1, 1]} : vector<8x384xf32> to vector<8x128xf32>
    %74 = vector.extract_strided_slice %69 {offsets = [0, 256], sizes = [8, 128], strides = [1, 1]} : vector<8x384xf32> to vector<8x128xf32>
    %75 = arith.mulf %73, %57 : vector<8x128xf32>
    %76 = arith.mulf %72, %71 : vector<8x128xf32>
    %77 = arith.addf %75, %76 : vector<8x128xf32>
    %78 = math.tanh %77 : vector<8x128xf32>
    %79 = arith.mulf %74, %78 : vector<8x128xf32>
    %c0_33 = arith.constant 0 : index
    %c0_34 = arith.constant 0 : index
    %80 = vector.load %arg6[%c0_33, %c0_34] : memref<8x128xf32, #tpu.memory_space<vmem>>, vector<8x128xf32>
    tpu.vector_store %arg6[%c0_33, %c0_34], %79 {strides = array<i32>} : memref<8x128xf32, #tpu.memory_space<vmem>>, vector<8x128xf32>,
    %c0_35 = arith.constant 0 : index
    %c0_36 = arith.constant 0 : index
    %81 = vector.load %arg7[%c0_35, %c0_36] : memref<8x128xf32, #tpu.memory_space<vmem>>, vector<8x128xf32>
    tpu.vector_store %arg7[%c0_35, %c0_36], %77 {strides = array<i32>} : memref<8x128xf32, #tpu.memory_space<vmem>>, vector<8x128xf32>,
    %c3_i32 = arith.constant 3 : i32
    %c0_37 = arith.constant 0 : index
    %c0_38 = arith.constant 0 : index
    %82 = vector.load %arg6[%c0_37, %c0_38] : memref<8x128xf32, #tpu.memory_space<vmem>>, vector<8x128xf32>
    %c0_39 = arith.constant 0 : index
    %c0_40 = arith.constant 0 : index
    %83 = vector.load %arg7[%c0_39, %c0_40] : memref<8x128xf32, #tpu.memory_space<vmem>>, vector<8x128xf32>
    %c8_i32_41 = arith.constant 8 : i32
    %84 = arith.muli %c3_i32, %c8_i32_41 : i32
    %85 = tpu.assume_multiple %84, 8 : i32
    %86 = arith.index_cast %85 : i32 to index
    %c0_42 = arith.constant 0 : index
    %87 = vector.load %arg1[%86, %c0_42] : memref<64x512xf32, #tpu.memory_space<vmem>>, vector<8x512xf32>
    %cst_43 = arith.constant dense<0.000000e+00> : vector<8x512xf32>
    %88 = tpu.matmul %82, %3, %cst_43 {dimension_numbers = #tpu.dot_dimension_numbers<[1], [0], [0], [1], [0, 0, 1, 1], [], []>} : vector<8x128xf32>, vector<128x512xf32>, vector<8x512xf32> -> vector<8x512xf32>
    %89 = arith.addf %87, %88 : vector<8x512xf32>
    %90 = vector.extract_strided_slice %89 {offsets = [0, 0], sizes = [8, 384], strides = [1, 1]} : vector<8x512xf32> to vector<8x384xf32>
    %91 = arith.negf %90 : vector<8x384xf32>
    %92 = math.exp %91 : vector<8x384xf32>
    %cst_44 = arith.constant 1.000000e+00 : f32
    %93 = vector.broadcast %cst_44 : f32 to vector<8x384xf32>
    %94 = arith.addf %93, %92 : vector<8x384xf32>
    %95 = arith.divf %93, %94 : vector<8x384xf32>
    %96 = vector.extract_strided_slice %89 {offsets = [0, 384], sizes = [8, 128], strides = [1, 1]} : vector<8x512xf32> to vector<8x128xf32>
    %97 = math.tanh %96 : vector<8x128xf32>
    %98 = vector.extract_strided_slice %95 {offsets = [0, 0], sizes = [8, 128], strides = [1, 1]} : vector<8x384xf32> to vector<8x128xf32>
    %99 = vector.extract_strided_slice %95 {offsets = [0, 128], sizes = [8, 128], strides = [1, 1]} : vector<8x384xf32> to vector<8x128xf32>
    %100 = vector.extract_strided_slice %95 {offsets = [0, 256], sizes = [8, 128], strides = [1, 1]} : vector<8x384xf32> to vector<8x128xf32>
    %101 = arith.mulf %99, %83 : vector<8x128xf32>
    %102 = arith.mulf %98, %97 : vector<8x128xf32>
    %103 = arith.addf %101, %102 : vector<8x128xf32>
    %104 = math.tanh %103 : vector<8x128xf32>
    %105 = arith.mulf %100, %104 : vector<8x128xf32>
    %c0_45 = arith.constant 0 : index
    %c0_46 = arith.constant 0 : index
    %106 = vector.load %arg6[%c0_45, %c0_46] : memref<8x128xf32, #tpu.memory_space<vmem>>, vector<8x128xf32>
    tpu.vector_store %arg6[%c0_45, %c0_46], %105 {strides = array<i32>} : memref<8x128xf32, #tpu.memory_space<vmem>>, vector<8x128xf32>,
    %c0_47 = arith.constant 0 : index
    %c0_48 = arith.constant 0 : index
    %107 = vector.load %arg7[%c0_47, %c0_48] : memref<8x128xf32, #tpu.memory_space<vmem>>, vector<8x128xf32>
    tpu.vector_store %arg7[%c0_47, %c0_48], %103 {strides = array<i32>} : memref<8x128xf32, #tpu.memory_space<vmem>>, vector<8x128xf32>,
    %c4_i32 = arith.constant 4 : i32
    %c0_49 = arith.constant 0 : index
    %c0_50 = arith.constant 0 : index
    %108 = vector.load %arg6[%c0_49, %c0_50] : memref<8x128xf32, #tpu.memory_space<vmem>>, vector<8x128xf32>
    %c0_51 = arith.constant 0 : index
    %c0_52 = arith.constant 0 : index
    %109 = vector.load %arg7[%c0_51, %c0_52] : memref<8x128xf32, #tpu.memory_space<vmem>>, vector<8x128xf32>
    %c8_i32_53 = arith.constant 8 : i32
    %110 = arith.muli %c4_i32, %c8_i32_53 : i32
    %111 = tpu.assume_multiple %110, 8 : i32
    %112 = arith.index_cast %111 : i32 to index
    %c0_54 = arith.constant 0 : index
    %113 = vector.load %arg1[%112, %c0_54] : memref<64x512xf32, #tpu.memory_space<vmem>>, vector<8x512xf32>
    %cst_55 = arith.constant dense<0.000000e+00> : vector<8x512xf32>
    %114 = tpu.matmul %108, %3, %cst_55 {dimension_numbers = #tpu.dot_dimension_numbers<[1], [0], [0], [1], [0, 0, 1, 1], [], []>} : vector<8x128xf32>, vector<128x512xf32>, vector<8x512xf32> -> vector<8x512xf32>
    %115 = arith.addf %113, %114 : vector<8x512xf32>
    %116 = vector.extract_strided_slice %115 {offsets = [0, 0], sizes = [8, 384], strides = [1, 1]} : vector<8x512xf32> to vector<8x384xf32>
    %117 = arith.negf %116 : vector<8x384xf32>
    %118 = math.exp %117 : vector<8x384xf32>
    %cst_56 = arith.constant 1.000000e+00 : f32
    %119 = vector.broadcast %cst_56 : f32 to vector<8x384xf32>
    %120 = arith.addf %119, %118 : vector<8x384xf32>
    %121 = arith.divf %119, %120 : vector<8x384xf32>
    %122 = vector.extract_strided_slice %115 {offsets = [0, 384], sizes = [8, 128], strides = [1, 1]} : vector<8x512xf32> to vector<8x128xf32>
    %123 = math.tanh %122 : vector<8x128xf32>
    %124 = vector.extract_strided_slice %121 {offsets = [0, 0], sizes = [8, 128], strides = [1, 1]} : vector<8x384xf32> to vector<8x128xf32>
    %125 = vector.extract_strided_slice %121 {offsets = [0, 128], sizes = [8, 128], strides = [1, 1]} : vector<8x384xf32> to vector<8x128xf32>
    %126 = vector.extract_strided_slice %121 {offsets = [0, 256], sizes = [8, 128], strides = [1, 1]} : vector<8x384xf32> to vector<8x128xf32>
    %127 = arith.mulf %125, %109 : vector<8x128xf32>
    %128 = arith.mulf %124, %123 : vector<8x128xf32>
    %129 = arith.addf %127, %128 : vector<8x128xf32>
    %130 = math.tanh %129 : vector<8x128xf32>
    %131 = arith.mulf %126, %130 : vector<8x128xf32>
    %c0_57 = arith.constant 0 : index
    %c0_58 = arith.constant 0 : index
    %132 = vector.load %arg6[%c0_57, %c0_58] : memref<8x128xf32, #tpu.memory_space<vmem>>, vector<8x128xf32>
    tpu.vector_store %arg6[%c0_57, %c0_58], %131 {strides = array<i32>} : memref<8x128xf32, #tpu.memory_space<vmem>>, vector<8x128xf32>,
    %c0_59 = arith.constant 0 : index
    %c0_60 = arith.constant 0 : index
    %133 = vector.load %arg7[%c0_59, %c0_60] : memref<8x128xf32, #tpu.memory_space<vmem>>, vector<8x128xf32>
    tpu.vector_store %arg7[%c0_59, %c0_60], %129 {strides = array<i32>} : memref<8x128xf32, #tpu.memory_space<vmem>>, vector<8x128xf32>,
    %c5_i32 = arith.constant 5 : i32
    %c0_61 = arith.constant 0 : index
    %c0_62 = arith.constant 0 : index
    %134 = vector.load %arg6[%c0_61, %c0_62] : memref<8x128xf32, #tpu.memory_space<vmem>>, vector<8x128xf32>
    %c0_63 = arith.constant 0 : index
    %c0_64 = arith.constant 0 : index
    %135 = vector.load %arg7[%c0_63, %c0_64] : memref<8x128xf32, #tpu.memory_space<vmem>>, vector<8x128xf32>
    %c8_i32_65 = arith.constant 8 : i32
    %136 = arith.muli %c5_i32, %c8_i32_65 : i32
    %137 = tpu.assume_multiple %136, 8 : i32
    %138 = arith.index_cast %137 : i32 to index
    %c0_66 = arith.constant 0 : index
    %139 = vector.load %arg1[%138, %c0_66] : memref<64x512xf32, #tpu.memory_space<vmem>>, vector<8x512xf32>
    %cst_67 = arith.constant dense<0.000000e+00> : vector<8x512xf32>
    %140 = tpu.matmul %134, %3, %cst_67 {dimension_numbers = #tpu.dot_dimension_numbers<[1], [0], [0], [1], [0, 0, 1, 1], [], []>} : vector<8x128xf32>, vector<128x512xf32>, vector<8x512xf32> -> vector<8x512xf32>
    %141 = arith.addf %139, %140 : vector<8x512xf32>
    %142 = vector.extract_strided_slice %141 {offsets = [0, 0], sizes = [8, 384], strides = [1, 1]} : vector<8x512xf32> to vector<8x384xf32>
    %143 = arith.negf %142 : vector<8x384xf32>
    %144 = math.exp %143 : vector<8x384xf32>
    %cst_68 = arith.constant 1.000000e+00 : f32
    %145 = vector.broadcast %cst_68 : f32 to vector<8x384xf32>
    %146 = arith.addf %145, %144 : vector<8x384xf32>
    %147 = arith.divf %145, %146 : vector<8x384xf32>
    %148 = vector.extract_strided_slice %141 {offsets = [0, 384], sizes = [8, 128], strides = [1, 1]} : vector<8x512xf32> to vector<8x128xf32>
    %149 = math.tanh %148 : vector<8x128xf32>
    %150 = vector.extract_strided_slice %147 {offsets = [0, 0], sizes = [8, 128], strides = [1, 1]} : vector<8x384xf32> to vector<8x128xf32>
    %151 = vector.extract_strided_slice %147 {offsets = [0, 128], sizes = [8, 128], strides = [1, 1]} : vector<8x384xf32> to vector<8x128xf32>
    %152 = vector.extract_strided_slice %147 {offsets = [0, 256], sizes = [8, 128], strides = [1, 1]} : vector<8x384xf32> to vector<8x128xf32>
    %153 = arith.mulf %151, %135 : vector<8x128xf32>
    %154 = arith.mulf %150, %149 : vector<8x128xf32>
    %155 = arith.addf %153, %154 : vector<8x128xf32>
    %156 = math.tanh %155 : vector<8x128xf32>
    %157 = arith.mulf %152, %156 : vector<8x128xf32>
    %c0_69 = arith.constant 0 : index
    %c0_70 = arith.constant 0 : index
    %158 = vector.load %arg6[%c0_69, %c0_70] : memref<8x128xf32, #tpu.memory_space<vmem>>, vector<8x128xf32>
    tpu.vector_store %arg6[%c0_69, %c0_70], %157 {strides = array<i32>} : memref<8x128xf32, #tpu.memory_space<vmem>>, vector<8x128xf32>,
    %c0_71 = arith.constant 0 : index
    %c0_72 = arith.constant 0 : index
    %159 = vector.load %arg7[%c0_71, %c0_72] : memref<8x128xf32, #tpu.memory_space<vmem>>, vector<8x128xf32>
    tpu.vector_store %arg7[%c0_71, %c0_72], %155 {strides = array<i32>} : memref<8x128xf32, #tpu.memory_space<vmem>>, vector<8x128xf32>,
    %c6_i32 = arith.constant 6 : i32
    %c0_73 = arith.constant 0 : index
    %c0_74 = arith.constant 0 : index
    %160 = vector.load %arg6[%c0_73, %c0_74] : memref<8x128xf32, #tpu.memory_space<vmem>>, vector<8x128xf32>
    %c0_75 = arith.constant 0 : index
    %c0_76 = arith.constant 0 : index
    %161 = vector.load %arg7[%c0_75, %c0_76] : memref<8x128xf32, #tpu.memory_space<vmem>>, vector<8x128xf32>
    %c8_i32_77 = arith.constant 8 : i32
    %162 = arith.muli %c6_i32, %c8_i32_77 : i32
    %163 = tpu.assume_multiple %162, 8 : i32
    %164 = arith.index_cast %163 : i32 to index
    %c0_78 = arith.constant 0 : index
    %165 = vector.load %arg1[%164, %c0_78] : memref<64x512xf32, #tpu.memory_space<vmem>>, vector<8x512xf32>
    %cst_79 = arith.constant dense<0.000000e+00> : vector<8x512xf32>
    %166 = tpu.matmul %160, %3, %cst_79 {dimension_numbers = #tpu.dot_dimension_numbers<[1], [0], [0], [1], [0, 0, 1, 1], [], []>} : vector<8x128xf32>, vector<128x512xf32>, vector<8x512xf32> -> vector<8x512xf32>
    %167 = arith.addf %165, %166 : vector<8x512xf32>
    %168 = vector.extract_strided_slice %167 {offsets = [0, 0], sizes = [8, 384], strides = [1, 1]} : vector<8x512xf32> to vector<8x384xf32>
    %169 = arith.negf %168 : vector<8x384xf32>
    %170 = math.exp %169 : vector<8x384xf32>
    %cst_80 = arith.constant 1.000000e+00 : f32
    %171 = vector.broadcast %cst_80 : f32 to vector<8x384xf32>
    %172 = arith.addf %171, %170 : vector<8x384xf32>
    %173 = arith.divf %171, %172 : vector<8x384xf32>
    %174 = vector.extract_strided_slice %167 {offsets = [0, 384], sizes = [8, 128], strides = [1, 1]} : vector<8x512xf32> to vector<8x128xf32>
    %175 = math.tanh %174 : vector<8x128xf32>
    %176 = vector.extract_strided_slice %173 {offsets = [0, 0], sizes = [8, 128], strides = [1, 1]} : vector<8x384xf32> to vector<8x128xf32>
    %177 = vector.extract_strided_slice %173 {offsets = [0, 128], sizes = [8, 128], strides = [1, 1]} : vector<8x384xf32> to vector<8x128xf32>
    %178 = vector.extract_strided_slice %173 {offsets = [0, 256], sizes = [8, 128], strides = [1, 1]} : vector<8x384xf32> to vector<8x128xf32>
    %179 = arith.mulf %177, %161 : vector<8x128xf32>
    %180 = arith.mulf %176, %175 : vector<8x128xf32>
    %181 = arith.addf %179, %180 : vector<8x128xf32>
    %182 = math.tanh %181 : vector<8x128xf32>
    %183 = arith.mulf %178, %182 : vector<8x128xf32>
    %c0_81 = arith.constant 0 : index
    %c0_82 = arith.constant 0 : index
    %184 = vector.load %arg6[%c0_81, %c0_82] : memref<8x128xf32, #tpu.memory_space<vmem>>, vector<8x128xf32>
    tpu.vector_store %arg6[%c0_81, %c0_82], %183 {strides = array<i32>} : memref<8x128xf32, #tpu.memory_space<vmem>>, vector<8x128xf32>,
    %c0_83 = arith.constant 0 : index
    %c0_84 = arith.constant 0 : index
    %185 = vector.load %arg7[%c0_83, %c0_84] : memref<8x128xf32, #tpu.memory_space<vmem>>, vector<8x128xf32>
    tpu.vector_store %arg7[%c0_83, %c0_84], %181 {strides = array<i32>} : memref<8x128xf32, #tpu.memory_space<vmem>>, vector<8x128xf32>,
    %c7_i32 = arith.constant 7 : i32
    %c0_85 = arith.constant 0 : index
    %c0_86 = arith.constant 0 : index
    %186 = vector.load %arg6[%c0_85, %c0_86] : memref<8x128xf32, #tpu.memory_space<vmem>>, vector<8x128xf32>
    %c0_87 = arith.constant 0 : index
    %c0_88 = arith.constant 0 : index
    %187 = vector.load %arg7[%c0_87, %c0_88] : memref<8x128xf32, #tpu.memory_space<vmem>>, vector<8x128xf32>
    %c8_i32_89 = arith.constant 8 : i32
    %188 = arith.muli %c7_i32, %c8_i32_89 : i32
    %189 = tpu.assume_multiple %188, 8 : i32
    %190 = arith.index_cast %189 : i32 to index
    %c0_90 = arith.constant 0 : index
    %191 = vector.load %arg1[%190, %c0_90] : memref<64x512xf32, #tpu.memory_space<vmem>>, vector<8x512xf32>
    %cst_91 = arith.constant dense<0.000000e+00> : vector<8x512xf32>
    %192 = tpu.matmul %186, %3, %cst_91 {dimension_numbers = #tpu.dot_dimension_numbers<[1], [0], [0], [1], [0, 0, 1, 1], [], []>} : vector<8x128xf32>, vector<128x512xf32>, vector<8x512xf32> -> vector<8x512xf32>
    %193 = arith.addf %191, %192 : vector<8x512xf32>
    %194 = vector.extract_strided_slice %193 {offsets = [0, 0], sizes = [8, 384], strides = [1, 1]} : vector<8x512xf32> to vector<8x384xf32>
    %195 = arith.negf %194 : vector<8x384xf32>
    %196 = math.exp %195 : vector<8x384xf32>
    %cst_92 = arith.constant 1.000000e+00 : f32
    %197 = vector.broadcast %cst_92 : f32 to vector<8x384xf32>
    %198 = arith.addf %197, %196 : vector<8x384xf32>
    %199 = arith.divf %197, %198 : vector<8x384xf32>
    %200 = vector.extract_strided_slice %193 {offsets = [0, 384], sizes = [8, 128], strides = [1, 1]} : vector<8x512xf32> to vector<8x128xf32>
    %201 = math.tanh %200 : vector<8x128xf32>
    %202 = vector.extract_strided_slice %199 {offsets = [0, 0], sizes = [8, 128], strides = [1, 1]} : vector<8x384xf32> to vector<8x128xf32>
    %203 = vector.extract_strided_slice %199 {offsets = [0, 128], sizes = [8, 128], strides = [1, 1]} : vector<8x384xf32> to vector<8x128xf32>
    %204 = vector.extract_strided_slice %199 {offsets = [0, 256], sizes = [8, 128], strides = [1, 1]} : vector<8x384xf32> to vector<8x128xf32>
    %205 = arith.mulf %203, %187 : vector<8x128xf32>
    %206 = arith.mulf %202, %201 : vector<8x128xf32>
    %207 = arith.addf %205, %206 : vector<8x128xf32>
    %208 = math.tanh %207 : vector<8x128xf32>
    %209 = arith.mulf %204, %208 : vector<8x128xf32>
    %c0_93 = arith.constant 0 : index
    %c0_94 = arith.constant 0 : index
    %210 = vector.load %arg6[%c0_93, %c0_94] : memref<8x128xf32, #tpu.memory_space<vmem>>, vector<8x128xf32>
    tpu.vector_store %arg6[%c0_93, %c0_94], %209 {strides = array<i32>} : memref<8x128xf32, #tpu.memory_space<vmem>>, vector<8x128xf32>,
    %c0_95 = arith.constant 0 : index
    %c0_96 = arith.constant 0 : index
    %211 = vector.load %arg7[%c0_95, %c0_96] : memref<8x128xf32, #tpu.memory_space<vmem>>, vector<8x128xf32>
    tpu.vector_store %arg7[%c0_95, %c0_96], %207 {strides = array<i32>} : memref<8x128xf32, #tpu.memory_space<vmem>>, vector<8x128xf32>,
    %c8_i32_97 = arith.constant 8 : i32
    %c0_i32_98 = arith.constant 0 : i32
    %212 = arith.cmpi eq, %arg0, %c0_i32_98 : i32
    %213 = arith.extui %212 : i1 to i32
    %c0_i32_99 = arith.constant 0 : i32
    %214 = arith.cmpi ne, %213, %c0_i32_99 : i32
    scf.if %214 {
      %c0_100 = arith.constant 0 : index
      %c0_101 = arith.constant 0 : index
      %215 = vector.load %arg6[%c0_100, %c0_101] : memref<8x128xf32, #tpu.memory_space<vmem>>, vector<8x128xf32>
      %c0_102 = arith.constant 0 : index
      %c0_103 = arith.constant 0 : index
      %216 = vector.load %arg3[%c0_102, %c0_103] : memref<128x20xf32, #tpu.memory_space<vmem>>, vector<128x20xf32>
      %cst_104 = arith.constant dense<0.000000e+00> : vector<8x20xf32>
      %217 = tpu.matmul %215, %216, %cst_104 {dimension_numbers = #tpu.dot_dimension_numbers<[1], [0], [0], [1], [0, 0, 1, 1], [], []>} : vector<8x128xf32>, vector<128x20xf32>, vector<8x20xf32> -> vector<8x20xf32>
      %c0_105 = arith.constant 0 : index
      %c0_106 = arith.constant 0 : index
      %218 = vector.load %arg4[%c0_105, %c0_106] : memref<1x20xf32, #tpu.memory_space<vmem>>, vector<1x20xf32>
      %219 = vector.broadcast %218 : vector<1x20xf32> to vector<8x20xf32>
      %220 = arith.addf %217, %219 : vector<8x20xf32>
      %cst_107 = arith.constant 0.000000e+00 : f32
      %221 = vector.broadcast %cst_107 : f32 to vector<8x20xf32>
      %222 = arith.maximumf %220, %221 : vector<8x20xf32>
      %c0_108 = arith.constant 0 : index
      %c0_109 = arith.constant 0 : index
      %223 = vector.load %arg5[%c0_108, %c0_109] : memref<8x20xf32, #tpu.memory_space<vmem>>, vector<8x20xf32>
      tpu.vector_store %arg5[%c0_108, %c0_109], %222 {strides = array<i32>} : memref<8x20xf32, #tpu.memory_space<vmem>>, vector<8x20xf32>,
    } else {
    }
    return
  }
  func.func @transform_0(%arg0: i32) -> (i32, i32) {
    %c0_i32 = arith.constant 0 : i32
    %c0_i32_0 = arith.constant 0 : i32
    return %arg0, %c0_i32 : i32, i32
  }
  func.func @transform_1(%arg0: i32) -> (i32, i32) {
    %c0_i32 = arith.constant 0 : i32
    %c0_i32_0 = arith.constant 0 : i32
    %c0_i32_1 = arith.constant 0 : i32
    return %c0_i32, %c0_i32_0 : i32, i32
  }
  func.func @transform_2(%arg0: i32) -> (i32, i32) {
    %c0_i32 = arith.constant 0 : i32
    %c0_i32_0 = arith.constant 0 : i32
    %c0_i32_1 = arith.constant 0 : i32
    return %c0_i32, %c0_i32_0 : i32, i32
  }
  func.func @transform_3(%arg0: i32) -> (i32, i32) {
    %c0_i32 = arith.constant 0 : i32
    %c0_i32_0 = arith.constant 0 : i32
    %c0_i32_1 = arith.constant 0 : i32
    return %c0_i32, %c0_i32_0 : i32, i32
  }
  func.func @transform_4(%arg0: i32) -> (i32, i32) {
    %c0_i32 = arith.constant 0 : i32
    %c0_i32_0 = arith.constant 0 : i32
    %c0_i32_1 = arith.constant 0 : i32
    return %c0_i32, %c0_i32_0 : i32, i32
  }
}

</mosaic_0001>

<llo_original>
// kernel: tpu_custom_call.1
$region0: #{tpu_custom_call.1}
  #allocation0 [shape = 'u32[]', space=smem, size = 0x4, offset = 0x4, fixed_abs, tag = 'smem constant byte address 0x4 - core index']
  #allocation1 [shape = 'u32[144,128]{1,0:T(1,128)}', space=vmem, size = 0x12000, scoped, tag = 'internal scratch']
  #allocation2 [shape = 'f32[8,128]{1,0:T(8,128)}', space=vmem, size = 0x1000, scoped, tag = 'scratch operand']
  #allocation3 [shape = 'f32[8,128]{1,0:T(8,128)}', space=vmem, size = 0x1000, scoped, tag = 'scratch operand']
  %s0 = inlined_call_operand.hbm [shape: f32[64,512], index: 0, kind: input, shape index: {}]
  %s1 = inlined_call_operand.hbm [shape: f32[128,512], index: 1, kind: input, shape index: {}]
  %s2 = inlined_call_operand.vmem [shape: f32[128,20], index: 2, kind: input, shape index: {}]
  %s3 = inlined_call_operand.vmem [shape: f32[1,20], index: 3, kind: input, shape index: {}]
  %s4 = inlined_call_operand.hbm [shape: f32[8,20], index: 4, kind: output, shape index: {}]
  %s5 = sld [smem:[#allocation0]]
  $region42: #{tpu_custom_call.1} parent=0
    _
  %s7 = ssub.s32 1, %s5
  %s8 = scalar_select 0, %s7, %s5
  $region1: #{tpu_custom_call.1} parent=0
    #allocation4 [shape = 'u8[131072]{0}', space=vmem, size = 0x20000, scoped, tag = 'input window, operand 0, single buffered']
    #allocation5 [shape = 's32[1]{0}', space=sflag, size = 0x4, scoped, tag = 'scoped memory for tpu_custom_call.1']
    #allocation6 [shape = 's32[1]{0}', space=sflag, size = 0x4, scoped, tag = 'scoped memory for tpu_custom_call.1']
    #allocation7 [shape = 'u8[262144]{0}', space=vmem, size = 0x40000, scoped, tag = 'input window, operand 1, single buffered']
    #allocation8 [shape = 's32[1]{0}', space=sflag, size = 0x4, scoped, tag = 'scoped memory for tpu_custom_call.1']
    #allocation9 [shape = 'u8[4096]{0}', space=vmem, size = 0x1000, scoped, tag = 'output window, operand 0, single buffered']
    %9 = vsyncpa [#allocation5], 0
    %10 = vsyncpa [#allocation8], 0
    %11 = vsyncpa [#allocation6], 0
    // Predicated region
    $region2: #{tpu_custom_call.1} parent=1 // pred_check
      _
    $region3: #{tpu_custom_call.1} parent=1 // pred_check_branch
      %13 = sbr.rel (0) target = $region5
    $region4: #{tpu_custom_call.1} parent=1 // pred_region
      %s15 = ssub.s32 4096, 4096
      %16 = vsyncadd [#allocation5], %s15
      %s17 = sshll.u32 [#allocation4], 4
      %s18 = int_to_ptr.vmem [resolvable:$true] %s17
      %23 = dma.hbm_to_vmem [thread:$0]  %s0, 4096, %s18, [#allocation5], 512, 512, 32
    $region5: #{tpu_custom_call.1} parent=1 // pred_fallthru
      _
    // Predicated region
    $region6: #{tpu_custom_call.1} parent=1 // pred_check
      _
    $region7: #{tpu_custom_call.1} parent=1 // pred_check_branch
      %25 = sbr.rel (0) target = $region9
    $region8: #{tpu_custom_call.1} parent=1 // pred_region
      %s27 = ssub.s32 8192, 8192
      %28 = vsyncadd [#allocation8], %s27
      %s29 = sshll.u32 [#allocation7], 4
      %s30 = int_to_ptr.vmem [resolvable:$true] %s29
      %35 = dma.hbm_to_vmem [thread:$0]  %s1, 8192, %s30, [#allocation8], 512, 512, 32
    $region9: #{tpu_custom_call.1} parent=1 // pred_fallthru
      _
    // Predicated region
    $region10: #{tpu_custom_call.1} parent=1 // pred_check
      _
    $region11: #{tpu_custom_call.1} parent=1 // pred_check_branch
      %37 = sbr.rel (0) target = $region13
    $region12: #{tpu_custom_call.1} parent=1 // pred_region
      _
    $region13: #{tpu_custom_call.1} parent=1 // pred_fallthru
      _
    // Predicated region
    $region14: #{tpu_custom_call.1} parent=1 // pred_check
      _
    $region15: #{tpu_custom_call.1} parent=1 // pred_check_branch
      %39 = sbr.rel (0) target = $region17
    $region16: #{tpu_custom_call.1} parent=1 // pred_region
      _
    $region17: #{tpu_custom_call.1} parent=1 // pred_fallthru
      _
    // Predicated region
    $region18: #{tpu_custom_call.1} parent=1 // pred_check
      _
    $region19: #{tpu_custom_call.1} parent=1 // pred_check_branch
      %41 = sbr.rel (0) target = $region21
    $region20: #{tpu_custom_call.1} parent=1 // pred_region
      %42 = dma.done [#allocation5], 4096
    $region21: #{tpu_custom_call.1} parent=1 // pred_fallthru
      _
    // Predicated region
    $region22: #{tpu_custom_call.1} parent=1 // pred_check
      _
    $region23: #{tpu_custom_call.1} parent=1 // pred_check_branch
      %44 = sbr.rel (0) target = $region25
    $region24: #{tpu_custom_call.1} parent=1 // pred_region
      %45 = dma.done [#allocation8], 8192
    $region25: #{tpu_custom_call.1} parent=1 // pred_fallthru
      _
    %p46 = scmp.eq.s32.totalorder 0, 0
    // Predicated region
    $region26: #{tpu_custom_call.1} parent=1 // pred_check
      %p47 = pneg %p46
    $region27: #{tpu_custom_call.1} parent=1 // pred_check_branch
      %49 = sbr.rel (%p47) target = $region29
    $region28: #{tpu_custom_call.1} parent=1 // pred_region
      %50 = vst [vmem:[#allocation2] sm:$0xff] 0.0
      %51 = vst [vmem:[#allocation3] sm:$0xff] 0.0
    $region29: #{tpu_custom_call.1} parent=1 // pred_fallthru
      _
    %v52 = vld [vmem:[#allocation7] sm:$0xff]
    %v53 = vld [vmem:[#allocation7 + $0x8] sm:$0xff]
    %v54 = vld [vmem:[#allocation7 + $0x10] sm:$0xff]
    %v55 = vld [vmem:[#allocation7 + $0x18] sm:$0xff]
    %v56 = vld [vmem:[#allocation7 + $0x20] sm:$0xff]
    %v57 = vld [vmem:[#allocation7 + $0x28] sm:$0xff]
    %v58 = vld [vmem:[#allocation7 + $0x30] sm:$0xff]
    %v59 = vld [vmem:[#allocation7 + $0x38] sm:$0xff]
    %v60 = vld [vmem:[#allocation7 + $0x40] sm:$0xff]
    %v61 = vld [vmem:[#allocation7 + $0x48] sm:$0xff]
    %v62 = vld [vmem:[#allocation7 + $0x50] sm:$0xff]
    %v63 = vld [vmem:[#allocation7 + $0x58] sm:$0xff]
    %v64 = vld [vmem:[#allocation7 + $0x60] sm:$0xff]
    %v65 = vld [vmem:[#allocation7 + $0x68] sm:$0xff]
    %v66 = vld [vmem:[#allocation7 + $0x70] sm:$0xff]
    %v67 = vld [vmem:[#allocation7 + $0x78] sm:$0xff]
    %v68 = vld [vmem:[#allocation7 + $0x80] sm:$0xff]
    %v69 = vld [vmem:[#allocation7 + $0x88] sm:$0xff]
    %v70 = vld [vmem:[#allocation7 + $0x90] sm:$0xff]
    %v71 = vld [vmem:[#allocation7 + $0x98] sm:$0xff]
    %v72 = vld [vmem:[#allocation7 + $0xa0] sm:$0xff]
    %v73 = vld [vmem:[#allocation7 + $0xa8] sm:$0xff]
    %v74 = vld [vmem:[#allocation7 + $0xb0] sm:$0xff]
    %v75 = vld [vmem:[#allocation7 + $0xb8] sm:$0xff]
    %v76 = vld [vmem:[#allocation7 + $0xc0] sm:$0xff]
    %v77 = vld [vmem:[#allocation7 + $0xc8] sm:$0xff]
    %v78 = vld [vmem:[#allocation7 + $0xd0] sm:$0xff]
    %v79 = vld [vmem:[#allocation7 + $0xd8] sm:$0xff]
    %v80 = vld [vmem:[#allocation7 + $0xe0] sm:$0xff]
    %v81 = vld [vmem:[#allocation7 + $0xe8] sm:$0xff]
    %v82 = vld [vmem:[#allocation7 + $0xf0] sm:$0xff]
    %v83 = vld [vmem:[#allocation7 + $0xf8] sm:$0xff]
    %v84 = vld [vmem:[#allocation7 + $0x100] sm:$0xff]
    %v85 = vld [vmem:[#allocation7 + $0x108] sm:$0xff]
    %v86 = vld [vmem:[#allocation7 + $0x110] sm:$0xff]
    %v87 = vld [vmem:[#allocation7 + $0x118] sm:$0xff]
    %v88 = vld [vmem:[#allocation7 + $0x120] sm:$0xff]
    %v89 = vld [vmem:[#allocation7 + $0x128] sm:$0xff]
    %v90 = vld [vmem:[#allocation7 + $0x130] sm:$0xff]
    %v91 = vld [vmem:[#allocation7 + $0x138] sm:$0xff]
    %v92 = vld [vmem:[#allocation7 + $0x140] sm:$0xff]
    %v93 = vld [vmem:[#allocation7 + $0x148] sm:$0xff]
    %v94 = vld [vmem:[#allocation7 + $0x150] sm:$0xff]
    %v95 = vld [vmem:[#allocation7 + $0x158] sm:$0xff]
    %v96 = vld [vmem:[#allocation7 + $0x160] sm:$0xff]
    %v97 = vld [vmem:[#allocation7 + $0x168] sm:$0xff]
    %v98 = vld [vmem:[#allocation7 + $0x170] sm:$0xff]
    %v99 = vld [vmem:[#allocation7 + $0x178] sm:$0xff]
    %v100 = vld [vmem:[#allocation7 + $0x180] sm:$0xff]
    %v101 = vld [vmem:[#allocation7 + $0x188] sm:$0xff]
    %v102 = vld [vmem:[#allocation7 + $0x190] sm:$0xff]
    %v103 = vld [vmem:[#allocation7 + $0x198] sm:$0xff]
    %v104 = vld [vmem:[#allocation7 + $0x1a0] sm:$0xff]
    %v105 = vld [vmem:[#allocation7 + $0x1a8] sm:$0xff]
    %v106 = vld [vmem:[#allocation7 + $0x1b0] sm:$0xff]
    %v107 = vld [vmem:[#allocation7 + $0x1b8] sm:$0xff]
    %v108 = vld [vmem:[#allocation7 + $0x1c0] sm:$0xff]
    %v109 = vld [vmem:[#allocation7 + $0x1c8] sm:$0xff]
    %v110 = vld [vmem:[#allocation7 + $0x1d0] sm:$0xff]
    %v111 = vld [vmem:[#allocation7 + $0x1d8] sm:$0xff]
    %v112 = vld [vmem:[#allocation7 + $0x1e0] sm:$0xff]
    %v113 = vld [vmem:[#allocation7 + $0x1e8] sm:$0xff]
    %v114 = vld [vmem:[#allocation7 + $0x1f0] sm:$0xff]
    %v115 = vld [vmem:[#allocation7 + $0x1f8] sm:$0xff]
    %v116 = vld [vmem:[#allocation2] sm:$0xff]
    %v117 = vld [vmem:[#allocation3] sm:$0xff]
    %s118 = smul.u32 0, 4
    %s119 = smul.addr %s118, 8
    %s120 = scalar_lea.vmem [#allocation4], %s119
    %v121 = vld [vmem:[%s120] sm:$0xff]
    %v122 = vld [vmem:[%s120 + $0x8] sm:$0xff]
    %v123 = vld [vmem:[%s120 + $0x10] sm:$0xff]
    %v124 = vld [vmem:[%s120 + $0x18] sm:$0xff]
    %125 = vmatprep.subr.mxu0 %v53
    %126 = vmatpush1.msra.mxu0 %v52
    %127 = vmatprep.subr.mxu0 %v57
    %128 = vmatpush1.msra.mxu0 %v56
    %129 = vmatprep.subr.mxu0 %v61
    %130 = vmatpush1.msra.mxu0 %v60
    %131 = vmatprep.subr.mxu0 %v65
    %132 = vmatpush1.msra.mxu0 %v64
    %133 = vmatprep.subr.mxu0 %v69
    %134 = vmatpush1.msra.mxu0 %v68
    %135 = vmatprep.subr.mxu0 %v73
    %136 = vmatpush1.msra.mxu0 %v72
    %137 = vmatprep.subr.mxu0 %v77
    %138 = vmatpush1.msra.mxu0 %v76
    %139 = vmatprep.subr.mxu0 %v81
    %140 = vmatpush1.msra.mxu0 %v80
    %141 = vmatprep.subr.mxu0 %v85
    %142 = vmatpush1.msra.mxu0 %v84
    %143 = vmatprep.subr.mxu0 %v89
    %144 = vmatpush1.msra.mxu0 %v88
    %145 = vmatprep.subr.mxu0 %v93
    %146 = vmatpush1.msra.mxu0 %v92
    %147 = vmatprep.subr.mxu0 %v97
    %148 = vmatpush1.msra.mxu0 %v96
    %149 = vmatprep.subr.mxu0 %v101
    %150 = vmatpush1.msra.mxu0 %v100
    %151 = vmatprep.subr.mxu0 %v105
    %152 = vmatpush1.msra.mxu0 %v104
    %153 = vmatprep.subr.mxu0 %v109
    %154 = vmatpush1.msra.mxu0 %v108
    %155 = vmatprep.subr.mxu0 %v113
    %156 = vmatpush1.msra.mxu0 %v112
    %157 = vmatprep.subr.mxu0 0.0
    %158 = vmatpush1.msra.mxu0 0.0
    %159 = vmatprep.subr.mxu0 0.0
    %160 = vmatpush1.msra.mxu0 0.0
    %161 = vmatprep.subr.mxu0 0.0
    %162 = vmatpush1.msra.mxu0 0.0
    %163 = vmatprep.subr.mxu0 0.0
    %164 = vmatpush1.msra.mxu0 0.0
    %165 = vmatprep.subr.mxu0 0.0
    %166 = vmatpush1.msra.mxu0 0.0
    %167 = vmatprep.subr.mxu0 0.0
    %168 = vmatpush1.msra.mxu0 0.0
    %169 = vmatprep.subr.mxu0 0.0
    %170 = vmatpush1.msra.mxu0 0.0
    %171 = vmatprep.subr.mxu0 0.0
    %172 = vmatpush1.msra.mxu0 0.0
    %173 = vmatprep.subr.mxu0 0.0
    %174 = vmatpush1.msra.mxu0 0.0
    %175 = vmatprep.subr.mxu0 0.0
    %176 = vmatpush1.msra.mxu0 0.0
    %177 = vmatprep.subr.mxu0 0.0
    %178 = vmatpush1.msra.mxu0 0.0
    %179 = vmatprep.subr.mxu0 0.0
    %180 = vmatpush1.msra.mxu0 0.0
    %181 = vmatprep.subr.mxu0 0.0
    %182 = vmatpush1.msra.mxu0 0.0
    %183 = vmatprep.subr.mxu0 0.0
    %184 = vmatpush1.msra.mxu0 0.0
    %185 = vmatprep.subr.mxu0 0.0
    %186 = vmatpush1.msra.mxu0 0.0
    %187 = vmatprep.subr.mxu0 0.0
    %188 = vmatpush1.msra.mxu0 0.0
    %189 = vmatprep.mubr.f32.mxu0 0.0
    %190 = vmatmul.mubr.f32.gmra.mrb[0].mxu0 %v116
    %v191 = vpop.f32.mrb[0].mxu0
    %v192 = vadd.f32 0.0, %v191
    %v193 = vpop.f32.mrb[0].mxu0
    %v194 = vadd.f32 0.0, %v193
    %195 = vdwg.mxu0
    %196 = vmatprep.subr.mxu0 %v55
    %197 = vmatpush1.msra.mxu0 %v54
    %198 = vmatprep.subr.mxu0 %v59
    %199 = vmatpush1.msra.mxu0 %v58
    %200 = vmatprep.subr.mxu0 %v63
    %201 = vmatpush1.msra.mxu0 %v62
    %202 = vmatprep.subr.mxu0 %v67
    %203 = vmatpush1.msra.mxu0 %v66
    %204 = vmatprep.subr.mxu0 %v71
    %205 = vmatpush1.msra.mxu0 %v70
    %206 = vmatprep.subr.mxu0 %v75
    %207 = vmatpush1.msra.mxu0 %v74
    %208 = vmatprep.subr.mxu0 %v79
    %209 = vmatpush1.msra.mxu0 %v78
    %210 = vmatprep.subr.mxu0 %v83
    %211 = vmatpush1.msra.mxu0 %v82
    %212 = vmatprep.subr.mxu0 %v87
    %213 = vmatpush1.msra.mxu0 %v86
    %214 = vmatprep.subr.mxu0 %v91
    %215 = vmatpush1.msra.mxu0 %v90
    %216 = vmatprep.subr.mxu0 %v95
    %217 = vmatpush1.msra.mxu0 %v94
    %218 = vmatprep.subr.mxu0 %v99
    %219 = vmatpush1.msra.mxu0 %v98
    %220 = vmatprep.subr.mxu0 %v103
    %221 = vmatpush1.msra.mxu0 %v102
    %222 = vmatprep.subr.mxu0 %v107
    %223 = vmatpush1.msra.mxu0 %v106
    %224 = vmatprep.subr.mxu0 %v111
    %225 = vmatpush1.msra.mxu0 %v110
    %226 = vmatprep.subr.mxu0 %v115
    %227 = vmatpush1.msra.mxu0 %v114
    %228 = vmatprep.subr.mxu0 0.0
    %229 = vmatpush1.msra.mxu0 0.0
    %230 = vmatprep.subr.mxu0 0.0
    %231 = vmatpush1.msra.mxu0 0.0
    %232 = vmatprep.subr.mxu0 0.0
    %233 = vmatpush1.msra.mxu0 0.0
    %234 = vmatprep.subr.mxu0 0.0
    %235 = vmatpush1.msra.mxu0 0.0
    %236 = vmatprep.subr.mxu0 0.0
    %237 = vmatpush1.msra.mxu0 0.0
    %238 = vmatprep.subr.mxu0 0.0
    %239 = vmatpush1.msra.mxu0 0.0
    %240 = vmatprep.subr.mxu0 0.0
    %241 = vmatpush1.msra.mxu0 0.0
    %242 = vmatprep.subr.mxu0 0.0
    %243 = vmatpush1.msra.mxu0 0.0
    %244 = vmatprep.subr.mxu0 0.0
    %245 = vmatpush1.msra.mxu0 0.0
    %246 = vmatprep.subr.mxu0 0.0
    %247 = vmatpush1.msra.mxu0 0.0
    %248 = vmatprep.subr.mxu0 0.0
    %249 = vmatpush1.msra.mxu0 0.0
    %250 = vmatprep.subr.mxu0 0.0
    %251 = vmatpush1.msra.mxu0 0.0
    %252 = vmatprep.subr.mxu0 0.0
    %253 = vmatpush1.msra.mxu0 0.0
    %254 = vmatprep.subr.mxu0 0.0
    %255 = vmatpush1.msra.mxu0 0.0
    %256 = vmatprep.subr.mxu0 0.0
    %257 = vmatpush1.msra.mxu0 0.0
    %258 = vmatprep.subr.mxu0 0.0
    %259 = vmatpush1.msra.mxu0 0.0
    %260 = vmatprep.mubr.f32.mxu0 0.0
    %261 = vmatmul.mubr.f32.gmra.mrb[0].mxu0 %v116
    %v262 = vpop.f32.mrb[0].mxu0
    %v263 = vadd.f32 0.0, %v262
    %v264 = vpop.f32.mrb[0].mxu0
    %v265 = vadd.f32 0.0, %v264
    %266 = vdwg.mxu0
    %v267 = vadd.f32 %v121, %v192
    %v268 = vadd.f32 %v122, %v194
    %v269 = vadd.f32 %v123, %v263
    %v270 = vadd.f32 %v124, %v265
    %v271 = vxor.u32 %v267, 2147483648
    %v272 = vxor.u32 %v268, 2147483648
    %v273 = vxor.u32 %v269, 2147483648
    %v274 = vmul.f32 %v271, 1.442695
    %v275 = vpow.pop %v274
    %v276 = vmul.f32 %v272, 1.442695
    %v277 = vpow.pop %v276
    %v278 = vmul.f32 %v273, 1.442695
    %v279 = vpow.pop %v278
    %v280 = vadd.f32 %v275, 1.0
    %v281 = vadd.f32 %v277, 1.0
    %v282 = vadd.f32 %v279, 1.0
    %v283 = vrcp.pop %v280
    %v284 = vmul.f32 1.0, %v283
    %v285 = vrcp.pop %v281
    %v286 = vmul.f32 1.0, %v285
    %v287 = vrcp.pop %v282
    %v288 = vmul.f32 1.0, %v287
    %v289 = vtanh.pop %v270
    %v290 = vmul.f32 %v286, %v117
    %v291 = vmul.f32 %v284, %v289
    %v292 = vadd.f32 %v290, %v291
    %v293 = vtanh.pop %v292
    %v294 = vmul.f32 %v288, %v293
    %295 = vst [vmem:[#allocation2] sm:$0xff] %v294
    %296 = vst [vmem:[#allocation3] sm:$0xff] %v292
    %v297 = vld [vmem:[#allocation2] sm:$0xff]
    %v298 = vld [vmem:[#allocation3] sm:$0xff]
    %s299 = smul.u32 1, 4
    %s300 = smul.addr %s299, 8
    %s301 = scalar_lea.vmem [#allocation4], %s300
    %v302 = vld [vmem:[%s301] sm:$0xff]
    %v303 = vld [vmem:[%s301 + $0x8] sm:$0xff]
    %v304 = vld [vmem:[%s301 + $0x10] sm:$0xff]
    %v305 = vld [vmem:[%s301 + $0x18] sm:$0xff]
    %306 = vmatprep.subr.mxu0 %v53
    %307 = vmatpush1.msra.mxu0 %v52
    %308 = vmatprep.subr.mxu0 %v57
    %309 = vmatpush1.msra.mxu0 %v56
    %310 = vmatprep.subr.mxu0 %v61
    %311 = vmatpush1.msra.mxu0 %v60
    %312 = vmatprep.subr.mxu0 %v65
    %313 = vmatpush1.msra.mxu0 %v64
    %314 = vmatprep.subr.mxu0 %v69
    %315 = vmatpush1.msra.mxu0 %v68
    %316 = vmatprep.subr.mxu0 %v73
    %317 = vmatpush1.msra.mxu0 %v72
    %318 = vmatprep.subr.mxu0 %v77
    %319 = vmatpush1.msra.mxu0 %v76
    %320 = vmatprep.subr.mxu0 %v81
    %321 = vmatpush1.msra.mxu0 %v80
    %322 = vmatprep.subr.mxu0 %v85
    %323 = vmatpush1.msra.mxu0 %v84
    %324 = vmatprep.subr.mxu0 %v89
    %325 = vmatpush1.msra.mxu0 %v88
    %326 = vmatprep.subr.mxu0 %v93
    %327 = vmatpush1.msra.mxu0 %v92
    %328 = vmatprep.subr.mxu0 %v97
    %329 = vmatpush1.msra.mxu0 %v96
    %330 = vmatprep.subr.mxu0 %v101
    %331 = vmatpush1.msra.mxu0 %v100
    %332 = vmatprep.subr.mxu0 %v105
    %333 = vmatpush1.msra.mxu0 %v104
    %334 = vmatprep.subr.mxu0 %v109
    %335 = vmatpush1.msra.mxu0 %v108
    %336 = vmatprep.subr.mxu0 %v113
    %337 = vmatpush1.msra.mxu0 %v112
    %338 = vmatprep.subr.mxu0 0.0
    %339 = vmatpush1.msra.mxu0 0.0
    %340 = vmatprep.subr.mxu0 0.0
    %341 = vmatpush1.msra.mxu0 0.0
    %342 = vmatprep.subr.mxu0 0.0
    %343 = vmatpush1.msra.mxu0 0.0
    %344 = vmatprep.subr.mxu0 0.0
    %345 = vmatpush1.msra.mxu0 0.0
    %346 = vmatprep.subr.mxu0 0.0
    %347 = vmatpush1.msra.mxu0 0.0
    %348 = vmatprep.subr.mxu0 0.0
    %349 = vmatpush1.msra.mxu0 0.0
    %350 = vmatprep.subr.mxu0 0.0
    %351 = vmatpush1.msra.mxu0 0.0
    %352 = vmatprep.subr.mxu0 0.0
    %353 = vmatpush1.msra.mxu0 0.0
    %354 = vmatprep.subr.mxu0 0.0
    %355 = vmatpush1.msra.mxu0 0.0
    %356 = vmatprep.subr.mxu0 0.0
    %357 = vmatpush1.msra.mxu0 0.0
    %358 = vmatprep.subr.mxu0 0.0
    %359 = vmatpush1.msra.mxu0 0.0
    %360 = vmatprep.subr.mxu0 0.0
    %361 = vmatpush1.msra.mxu0 0.0
    %362 = vmatprep.subr.mxu0 0.0
    %363 = vmatpush1.msra.mxu0 0.0
    %364 = vmatprep.subr.mxu0 0.0
    %365 = vmatpush1.msra.mxu0 0.0
    %366 = vmatprep.subr.mxu0 0.0
    %367 = vmatpush1.msra.mxu0 0.0
    %368 = vmatprep.subr.mxu0 0.0
    %369 = vmatpush1.msra.mxu0 0.0
    %370 = vmatprep.mubr.f32.mxu0 0.0
    %371 = vmatmul.mubr.f32.gmra.mrb[0].mxu0 %v297
    %v372 = vpop.f32.mrb[0].mxu0
    %v373 = vadd.f32 0.0, %v372
    %v374 = vpop.f32.mrb[0].mxu0
    %v375 = vadd.f32 0.0, %v374
    %376 = vdwg.mxu0
    %377 = vmatprep.subr.mxu0 %v55
    %378 = vmatpush1.msra.mxu0 %v54
    %379 = vmatprep.subr.mxu0 %v59
    %380 = vmatpush1.msra.mxu0 %v58
    %381 = vmatprep.subr.mxu0 %v63
    %382 = vmatpush1.msra.mxu0 %v62
    %383 = vmatprep.subr.mxu0 %v67
    %384 = vmatpush1.msra.mxu0 %v66
    %385 = vmatprep.subr.mxu0 %v71
    %386 = vmatpush1.msra.mxu0 %v70
    %387 = vmatprep.subr.mxu0 %v75
    %388 = vmatpush1.msra.mxu0 %v74
    %389 = vmatprep.subr.mxu0 %v79
    %390 = vmatpush1.msra.mxu0 %v78
    %391 = vmatprep.subr.mxu0 %v83
    %392 = vmatpush1.msra.mxu0 %v82
    %393 = vmatprep.subr.mxu0 %v87
    %394 = vmatpush1.msra.mxu0 %v86
    %395 = vmatprep.subr.mxu0 %v91
    %396 = vmatpush1.msra.mxu0 %v90
    %397 = vmatprep.subr.mxu0 %v95
    %398 = vmatpush1.msra.mxu0 %v94
    %399 = vmatprep.subr.mxu0 %v99
    %400 = vmatpush1.msra.mxu0 %v98
    %401 = vmatprep.subr.mxu0 %v103
    %402 = vmatpush1.msra.mxu0 %v102
    %403 = vmatprep.subr.mxu0 %v107
    %404 = vmatpush1.msra.mxu0 %v106
    %405 = vmatprep.subr.mxu0 %v111
    %406 = vmatpush1.msra.mxu0 %v110
    %407 = vmatprep.subr.mxu0 %v115
    %408 = vmatpush1.msra.mxu0 %v114
    %409 = vmatprep.subr.mxu0 0.0
    %410 = vmatpush1.msra.mxu0 0.0
    %411 = vmatprep.subr.mxu0 0.0
    %412 = vmatpush1.msra.mxu0 0.0
    %413 = vmatprep.subr.mxu0 0.0
    %414 = vmatpush1.msra.mxu0 0.0
    %415 = vmatprep.subr.mxu0 0.0
    %416 = vmatpush1.msra.mxu0 0.0
    %417 = vmatprep.subr.mxu0 0.0
    %418 = vmatpush1.msra.mxu0 0.0
    %419 = vmatprep.subr.mxu0 0.0
    %420 = vmatpush1.msra.mxu0 0.0
    %421 = vmatprep.subr.mxu0 0.0
    %422 = vmatpush1.msra.mxu0 0.0
    %423 = vmatprep.subr.mxu0 0.0
    %424 = vmatpush1.msra.mxu0 0.0
    %425 = vmatprep.subr.mxu0 0.0
    %426 = vmatpush1.msra.mxu0 0.0
    %427 = vmatprep.subr.mxu0 0.0
    %428 = vmatpush1.msra.mxu0 0.0
    %429 = vmatprep.subr.mxu0 0.0
    %430 = vmatpush1.msra.mxu0 0.0
    %431 = vmatprep.subr.mxu0 0.0
    %432 = vmatpush1.msra.mxu0 0.0
    %433 = vmatprep.subr.mxu0 0.0
    %434 = vmatpush1.msra.mxu0 0.0
    %435 = vmatprep.subr.mxu0 0.0
    %436 = vmatpush1.msra.mxu0 0.0
    %437 = vmatprep.subr.mxu0 0.0
    %438 = vmatpush1.msra.mxu0 0.0
    %439 = vmatprep.subr.mxu0 0.0
    %440 = vmatpush1.msra.mxu0 0.0
    %441 = vmatprep.mubr.f32.mxu0 0.0
    %442 = vmatmul.mubr.f32.gmra.mrb[0].mxu0 %v297
    %v443 = vpop.f32.mrb[0].mxu0
    %v444 = vadd.f32 0.0, %v443
    %v445 = vpop.f32.mrb[0].mxu0
    %v446 = vadd.f32 0.0, %v445
    %447 = vdwg.mxu0
    %v448 = vadd.f32 %v302, %v373
    %v449 = vadd.f32 %v303, %v375
    %v450 = vadd.f32 %v304, %v444
    %v451 = vadd.f32 %v305, %v446
    %v452 = vxor.u32 %v448, 2147483648
    %v453 = vxor.u32 %v449, 2147483648
    %v454 = vxor.u32 %v450, 2147483648
    %v455 = vmul.f32 %v452, 1.442695
    %v456 = vpow.pop %v455
    %v457 = vmul.f32 %v453, 1.442695
    %v458 = vpow.pop %v457
    %v459 = vmul.f32 %v454, 1.442695
    %v460 = vpow.pop %v459
    %v461 = vadd.f32 %v456, 1.0
    %v462 = vadd.f32 %v458, 1.0
    %v463 = vadd.f32 %v460, 1.0
    %v464 = vrcp.pop %v461
    %v465 = vmul.f32 1.0, %v464
    %v466 = vrcp.pop %v462
    %v467 = vmul.f32 1.0, %v466
    %v468 = vrcp.pop %v463
    %v469 = vmul.f32 1.0, %v468
    %v470 = vtanh.pop %v451
    %v471 = vmul.f32 %v467, %v298
    %v472 = vmul.f32 %v465, %v470
    %v473 = vadd.f32 %v471, %v472
    %v474 = vtanh.pop %v473
    %v475 = vmul.f32 %v469, %v474
    %476 = vst [vmem:[#allocation2] sm:$0xff] %v475
    %477 = vst [vmem:[#allocation3] sm:$0xff] %v473
    %v478 = vld [vmem:[#allocation2] sm:$0xff]
    %v479 = vld [vmem:[#allocation3] sm:$0xff]
    %s480 = smul.u32 2, 4
    %s481 = smul.addr %s480, 8
    %s482 = scalar_lea.vmem [#allocation4], %s481
    %v483 = vld [vmem:[%s482] sm:$0xff]
    %v484 = vld [vmem:[%s482 + $0x8] sm:$0xff]
    %v485 = vld [vmem:[%s482 + $0x10] sm:$0xff]
    %v486 = vld [vmem:[%s482 + $0x18] sm:$0xff]
    %487 = vmatprep.subr.mxu0 %v53
    %488 = vmatpush1.msra.mxu0 %v52
    %489 = vmatprep.subr.mxu0 %v57
    %490 = vmatpush1.msra.mxu0 %v56
    %491 = vmatprep.subr.mxu0 %v61
    %492 = vmatpush1.msra.mxu0 %v60
    %493 = vmatprep.subr.mxu0 %v65
    %494 = vmatpush1.msra.mxu0 %v64
    %495 = vmatprep.subr.mxu0 %v69
    %496 = vmatpush1.msra.mxu0 %v68
    %497 = vmatprep.subr.mxu0 %v73
    %498 = vmatpush1.msra.mxu0 %v72
    %499 = vmatprep.subr.mxu0 %v77
    %500 = vmatpush1.msra.mxu0 %v76
    %501 = vmatprep.subr.mxu0 %v81
    %502 = vmatpush1.msra.mxu0 %v80
    %503 = vmatprep.subr.mxu0 %v85
    %504 = vmatpush1.msra.mxu0 %v84
    %505 = vmatprep.subr.mxu0 %v89
    %506 = vmatpush1.msra.mxu0 %v88
    %507 = vmatprep.subr.mxu0 %v93
    %508 = vmatpush1.msra.mxu0 %v92
    %509 = vmatprep.subr.mxu0 %v97
    %510 = vmatpush1.msra.mxu0 %v96
    %511 = vmatprep.subr.mxu0 %v101
    %512 = vmatpush1.msra.mxu0 %v100
    %513 = vmatprep.subr.mxu0 %v105
    %514 = vmatpush1.msra.mxu0 %v104
    %515 = vmatprep.subr.mxu0 %v109
    %516 = vmatpush1.msra.mxu0 %v108
    %517 = vmatprep.subr.mxu0 %v113
    %518 = vmatpush1.msra.mxu0 %v112
    %519 = vmatprep.subr.mxu0 0.0
    %520 = vmatpush1.msra.mxu0 0.0
    %521 = vmatprep.subr.mxu0 0.0
    %522 = vmatpush1.msra.mxu0 0.0
    %523 = vmatprep.subr.mxu0 0.0
    %524 = vmatpush1.msra.mxu0 0.0
    %525 = vmatprep.subr.mxu0 0.0
    %526 = vmatpush1.msra.mxu0 0.0
    %527 = vmatprep.subr.mxu0 0.0
    %528 = vmatpush1.msra.mxu0 0.0
    %529 = vmatprep.subr.mxu0 0.0
    %530 = vmatpush1.msra.mxu0 0.0
    %531 = vmatprep.subr.mxu0 0.0
    %532 = vmatpush1.msra.mxu0 0.0
    %533 = vmatprep.subr.mxu0 0.0
    %534 = vmatpush1.msra.mxu0 0.0
    %535 = vmatprep.subr.mxu0 0.0
    %536 = vmatpush1.msra.mxu0 0.0
    %537 = vmatprep.subr.mxu0 0.0
    %538 = vmatpush1.msra.mxu0 0.0
    %539 = vmatprep.subr.mxu0 0.0
    %540 = vmatpush1.msra.mxu0 0.0
    %541 = vmatprep.subr.mxu0 0.0
    %542 = vmatpush1.msra.mxu0 0.0
    %543 = vmatprep.subr.mxu0 0.0
    %544 = vmatpush1.msra.mxu0 0.0
    %545 = vmatprep.subr.mxu0 0.0
    %546 = vmatpush1.msra.mxu0 0.0
    %547 = vmatprep.subr.mxu0 0.0
    %548 = vmatpush1.msra.mxu0 0.0
    %549 = vmatprep.subr.mxu0 0.0
    %550 = vmatpush1.msra.mxu0 0.0
    %551 = vmatprep.mubr.f32.mxu0 0.0
    %552 = vmatmul.mubr.f32.gmra.mrb[0].mxu0 %v478
    %v553 = vpop.f32.mrb[0].mxu0
    %v554 = vadd.f32 0.0, %v553
    %v555 = vpop.f32.mrb[0].mxu0
    %v556 = vadd.f32 0.0, %v555
    %557 = vdwg.mxu0
    %558 = vmatprep.subr.mxu0 %v55
    %559 = vmatpush1.msra.mxu0 %v54
    %560 = vmatprep.subr.mxu0 %v59
    %561 = vmatpush1.msra.mxu0 %v58
    %562 = vmatprep.subr.mxu0 %v63
    %563 = vmatpush1.msra.mxu0 %v62
    %564 = vmatprep.subr.mxu0 %v67
    %565 = vmatpush1.msra.mxu0 %v66
    %566 = vmatprep.subr.mxu0 %v71
    %567 = vmatpush1.msra.mxu0 %v70
    %568 = vmatprep.subr.mxu0 %v75
    %569 = vmatpush1.msra.mxu0 %v74
    %570 = vmatprep.subr.mxu0 %v79
    %571 = vmatpush1.msra.mxu0 %v78
    %572 = vmatprep.subr.mxu0 %v83
    %573 = vmatpush1.msra.mxu0 %v82
    %574 = vmatprep.subr.mxu0 %v87
    %575 = vmatpush1.msra.mxu0 %v86
    %576 = vmatprep.subr.mxu0 %v91
    %577 = vmatpush1.msra.mxu0 %v90
    %578 = vmatprep.subr.mxu0 %v95
    %579 = vmatpush1.msra.mxu0 %v94
    %580 = vmatprep.subr.mxu0 %v99
    %581 = vmatpush1.msra.mxu0 %v98
    %582 = vmatprep.subr.mxu0 %v103
    %583 = vmatpush1.msra.mxu0 %v102
    %584 = vmatprep.subr.mxu0 %v107
    %585 = vmatpush1.msra.mxu0 %v106
    %586 = vmatprep.subr.mxu0 %v111
    %587 = vmatpush1.msra.mxu0 %v110
    %588 = vmatprep.subr.mxu0 %v115
    %589 = vmatpush1.msra.mxu0 %v114
    %590 = vmatprep.subr.mxu0 0.0
    %591 = vmatpush1.msra.mxu0 0.0
    %592 = vmatprep.subr.mxu0 0.0
    %593 = vmatpush1.msra.mxu0 0.0
    %594 = vmatprep.subr.mxu0 0.0
    %595 = vmatpush1.msra.mxu0 0.0
    %596 = vmatprep.subr.mxu0 0.0
    %597 = vmatpush1.msra.mxu0 0.0
    %598 = vmatprep.subr.mxu0 0.0
    %599 = vmatpush1.msra.mxu0 0.0
    %600 = vmatprep.subr.mxu0 0.0
    %601 = vmatpush1.msra.mxu0 0.0
    %602 = vmatprep.subr.mxu0 0.0
    %603 = vmatpush1.msra.mxu0 0.0
    %604 = vmatprep.subr.mxu0 0.0
    %605 = vmatpush1.msra.mxu0 0.0
    %606 = vmatprep.subr.mxu0 0.0
    %607 = vmatpush1.msra.mxu0 0.0
    %608 = vmatprep.subr.mxu0 0.0
    %609 = vmatpush1.msra.mxu0 0.0
    %610 = vmatprep.subr.mxu0 0.0
    %611 = vmatpush1.msra.mxu0 0.0
    %612 = vmatprep.subr.mxu0 0.0
    %613 = vmatpush1.msra.mxu0 0.0
    %614 = vmatprep.subr.mxu0 0.0
    %615 = vmatpush1.msra.mxu0 0.0
    %616 = vmatprep.subr.mxu0 0.0
    %617 = vmatpush1.msra.mxu0 0.0
    %618 = vmatprep.subr.mxu0 0.0
    %619 = vmatpush1.msra.mxu0 0.0
    %620 = vmatprep.subr.mxu0 0.0
    %621 = vmatpush1.msra.mxu0 0.0
    %622 = vmatprep.mubr.f32.mxu0 0.0
    %623 = vmatmul.mubr.f32.gmra.mrb[0].mxu0 %v478
    %v624 = vpop.f32.mrb[0].mxu0
    %v625 = vadd.f32 0.0, %v624
    %v626 = vpop.f32.mrb[0].mxu0
    %v627 = vadd.f32 0.0, %v626
    %628 = vdwg.mxu0
    %v629 = vadd.f32 %v483, %v554
    %v630 = vadd.f32 %v484, %v556
    %v631 = vadd.f32 %v485, %v625
    %v632 = vadd.f32 %v486, %v627
    %v633 = vxor.u32 %v629, 2147483648
    %v634 = vxor.u32 %v630, 2147483648
    %v635 = vxor.u32 %v631, 2147483648
    %v636 = vmul.f32 %v633, 1.442695
    %v637 = vpow.pop %v636
    %v638 = vmul.f32 %v634, 1.442695
    %v639 = vpow.pop %v638
    %v640 = vmul.f32 %v635, 1.442695
    %v641 = vpow.pop %v640
    %v642 = vadd.f32 %v637, 1.0
    %v643 = vadd.f32 %v639, 1.0
    %v644 = vadd.f32 %v641, 1.0
    %v645 = vrcp.pop %v642
    %v646 = vmul.f32 1.0, %v645
    %v647 = vrcp.pop %v643
    %v648 = vmul.f32 1.0, %v647
    %v649 = vrcp.pop %v644
    %v650 = vmul.f32 1.0, %v649
    %v651 = vtanh.pop %v632
    %v652 = vmul.f32 %v648, %v479
    %v653 = vmul.f32 %v646, %v651
    %v654 = vadd.f32 %v652, %v653
    %v655 = vtanh.pop %v654
    %v656 = vmul.f32 %v650, %v655
    %657 = vst [vmem:[#allocation2] sm:$0xff] %v656
    %658 = vst [vmem:[#allocation3] sm:$0xff] %v654
    %v659 = vld [vmem:[#allocation2] sm:$0xff]
    %v660 = vld [vmem:[#allocation3] sm:$0xff]
    %s661 = smul.u32 3, 4
    %s662 = smul.addr %s661, 8
    %s663 = scalar_lea.vmem [#allocation4], %s662
    %v664 = vld [vmem:[%s663] sm:$0xff]
    %v665 = vld [vmem:[%s663 + $0x8] sm:$0xff]
    %v666 = vld [vmem:[%s663 + $0x10] sm:$0xff]
    %v667 = vld [vmem:[%s663 + $0x18] sm:$0xff]
    %668 = vmatprep.subr.mxu0 %v53
    %669 = vmatpush1.msra.mxu0 %v52
    %670 = vmatprep.subr.mxu0 %v57
    %671 = vmatpush1.msra.mxu0 %v56
    %672 = vmatprep.subr.mxu0 %v61
    %673 = vmatpush1.msra.mxu0 %v60
    %674 = vmatprep.subr.mxu0 %v65
    %675 = vmatpush1.msra.mxu0 %v64
    %676 = vmatprep.subr.mxu0 %v69
    %677 = vmatpush1.msra.mxu0 %v68
    %678 = vmatprep.subr.mxu0 %v73
    %679 = vmatpush1.msra.mxu0 %v72
    %680 = vmatprep.subr.mxu0 %v77
    %681 = vmatpush1.msra.mxu0 %v76
    %682 = vmatprep.subr.mxu0 %v81
    %683 = vmatpush1.msra.mxu0 %v80
    %684 = vmatprep.subr.mxu0 %v85
    %685 = vmatpush1.msra.mxu0 %v84
    %686 = vmatprep.subr.mxu0 %v89
    %687 = vmatpush1.msra.mxu0 %v88
    %688 = vmatprep.subr.mxu0 %v93
    %689 = vmatpush1.msra.mxu0 %v92
    %690 = vmatprep.subr.mxu0 %v97
    %691 = vmatpush1.msra.mxu0 %v96
    %692 = vmatprep.subr.mxu0 %v101
    %693 = vmatpush1.msra.mxu0 %v100
    %694 = vmatprep.subr.mxu0 %v105
    %695 = vmatpush1.msra.mxu0 %v104
    %696 = vmatprep.subr.mxu0 %v109
    %697 = vmatpush1.msra.mxu0 %v108
    %698 = vmatprep.subr.mxu0 %v113
    %699 = vmatpush1.msra.mxu0 %v112
    %700 = vmatprep.subr.mxu0 0.0
    %701 = vmatpush1.msra.mxu0 0.0
    %702 = vmatprep.subr.mxu0 0.0
    %703 = vmatpush1.msra.mxu0 0.0
    %704 = vmatprep.subr.mxu0 0.0
    %705 = vmatpush1.msra.mxu0 0.0
    %706 = vmatprep.subr.mxu0 0.0
    %707 = vmatpush1.msra.mxu0 0.0
    %708 = vmatprep.subr.mxu0 0.0
    %709 = vmatpush1.msra.mxu0 0.0
    %710 = vmatprep.subr.mxu0 0.0
    %711 = vmatpush1.msra.mxu0 0.0
    %712 = vmatprep.subr.mxu0 0.0
    %713 = vmatpush1.msra.mxu0 0.0
    %714 = vmatprep.subr.mxu0 0.0
    %715 = vmatpush1.msra.mxu0 0.0
    %716 = vmatprep.subr.mxu0 0.0
    %717 = vmatpush1.msra.mxu0 0.0
    %718 = vmatprep.subr.mxu0 0.0
    %719 = vmatpush1.msra.mxu0 0.0
    %720 = vmatprep.subr.mxu0 0.0
    %721 = vmatpush1.msra.mxu0 0.0
    %722 = vmatprep.subr.mxu0 0.0
    %723 = vmatpush1.msra.mxu0 0.0
    %724 = vmatprep.subr.mxu0 0.0
    %725 = vmatpush1.msra.mxu0 0.0
    %726 = vmatprep.subr.mxu0 0.0
    %727 = vmatpush1.msra.mxu0 0.0
    %728 = vmatprep.subr.mxu0 0.0
    %729 = vmatpush1.msra.mxu0 0.0
    %730 = vmatprep.subr.mxu0 0.0
    %731 = vmatpush1.msra.mxu0 0.0
    %732 = vmatprep.mubr.f32.mxu0 0.0
    %733 = vmatmul.mubr.f32.gmra.mrb[0].mxu0 %v659
    %v734 = vpop.f32.mrb[0].mxu0
    %v735 = vadd.f32 0.0, %v734
    %v736 = vpop.f32.mrb[0].mxu0
    %v737 = vadd.f32 0.0, %v736
    %738 = vdwg.mxu0
    %739 = vmatprep.subr.mxu0 %v55
    %740 = vmatpush1.msra.mxu0 %v54
    %741 = vmatprep.subr.mxu0 %v59
    %742 = vmatpush1.msra.mxu0 %v58
    %743 = vmatprep.subr.mxu0 %v63
    %744 = vmatpush1.msra.mxu0 %v62
    %745 = vmatprep.subr.mxu0 %v67
    %746 = vmatpush1.msra.mxu0 %v66
    %747 = vmatprep.subr.mxu0 %v71
    %748 = vmatpush1.msra.mxu0 %v70
    %749 = vmatprep.subr.mxu0 %v75
    %750 = vmatpush1.msra.mxu0 %v74
    %751 = vmatprep.subr.mxu0 %v79
    %752 = vmatpush1.msra.mxu0 %v78
    %753 = vmatprep.subr.mxu0 %v83
    %754 = vmatpush1.msra.mxu0 %v82
    %755 = vmatprep.subr.mxu0 %v87
    %756 = vmatpush1.msra.mxu0 %v86
    %757 = vmatprep.subr.mxu0 %v91
    %758 = vmatpush1.msra.mxu0 %v90
    %759 = vmatprep.subr.mxu0 %v95
    %760 = vmatpush1.msra.mxu0 %v94
    %761 = vmatprep.subr.mxu0 %v99
    %762 = vmatpush1.msra.mxu0 %v98
    %763 = vmatprep.subr.mxu0 %v103
    %764 = vmatpush1.msra.mxu0 %v102
    %765 = vmatprep.subr.mxu0 %v107
    %766 = vmatpush1.msra.mxu0 %v106
    %767 = vmatprep.subr.mxu0 %v111
    %768 = vmatpush1.msra.mxu0 %v110
    %769 = vmatprep.subr.mxu0 %v115
    %770 = vmatpush1.msra.mxu0 %v114
    %771 = vmatprep.subr.mxu0 0.0
    %772 = vmatpush1.msra.mxu0 0.0
    %773 = vmatprep.subr.mxu0 0.0
    %774 = vmatpush1.msra.mxu0 0.0
    %775 = vmatprep.subr.mxu0 0.0
    %776 = vmatpush1.msra.mxu0 0.0
    %777 = vmatprep.subr.mxu0 0.0
    %778 = vmatpush1.msra.mxu0 0.0
    %779 = vmatprep.subr.mxu0 0.0
    %780 = vmatpush1.msra.mxu0 0.0
    %781 = vmatprep.subr.mxu0 0.0
    %782 = vmatpush1.msra.mxu0 0.0
    %783 = vmatprep.subr.mxu0 0.0
    %784 = vmatpush1.msra.mxu0 0.0
    %785 = vmatprep.subr.mxu0 0.0
    %786 = vmatpush1.msra.mxu0 0.0
    %787 = vmatprep.subr.mxu0 0.0
    %788 = vmatpush1.msra.mxu0 0.0
    %789 = vmatprep.subr.mxu0 0.0
    %790 = vmatpush1.msra.mxu0 0.0
    %791 = vmatprep.subr.mxu0 0.0
    %792 = vmatpush1.msra.mxu0 0.0
    %793 = vmatprep.subr.mxu0 0.0
    %794 = vmatpush1.msra.mxu0 0.0
    %795 = vmatprep.subr.mxu0 0.0
    %796 = vmatpush1.msra.mxu0 0.0
    %797 = vmatprep.subr.mxu0 0.0
    %798 = vmatpush1.msra.mxu0 0.0
    %799 = vmatprep.subr.mxu0 0.0
    %800 = vmatpush1.msra.mxu0 0.0
    %801 = vmatprep.subr.mxu0 0.0
    %802 = vmatpush1.msra.mxu0 0.0
    %803 = vmatprep.mubr.f32.mxu0 0.0
    %804 = vmatmul.mubr.f32.gmra.mrb[0].mxu0 %v659
    %v805 = vpop.f32.mrb[0].mxu0
    %v806 = vadd.f32 0.0, %v805
    %v807 = vpop.f32.mrb[0].mxu0
    %v808 = vadd.f32 0.0, %v807
    %809 = vdwg.mxu0
    %v810 = vadd.f32 %v664, %v735
    %v811 = vadd.f32 %v665, %v737
    %v812 = vadd.f32 %v666, %v806
    %v813 = vadd.f32 %v667, %v808
    %v814 = vxor.u32 %v810, 2147483648
    %v815 = vxor.u32 %v811, 2147483648
    %v816 = vxor.u32 %v812, 2147483648
    %v817 = vmul.f32 %v814, 1.442695
    %v818 = vpow.pop %v817
    %v819 = vmul.f32 %v815, 1.442695
    %v820 = vpow.pop %v819
    %v821 = vmul.f32 %v816, 1.442695
    %v822 = vpow.pop %v821
    %v823 = vadd.f32 %v818, 1.0
    %v824 = vadd.f32 %v820, 1.0
    %v825 = vadd.f32 %v822, 1.0
    %v826 = vrcp.pop %v823
    %v827 = vmul.f32 1.0, %v826
    %v828 = vrcp.pop %v824
    %v829 = vmul.f32 1.0, %v828
    %v830 = vrcp.pop %v825
    %v831 = vmul.f32 1.0, %v830
    %v832 = vtanh.pop %v813
    %v833 = vmul.f32 %v829, %v660
    %v834 = vmul.f32 %v827, %v832
    %v835 = vadd.f32 %v833, %v834
    %v836 = vtanh.pop %v835
    %v837 = vmul.f32 %v831, %v836
    %838 = vst [vmem:[#allocation2] sm:$0xff] %v837
    %839 = vst [vmem:[#allocation3] sm:$0xff] %v835
    %v840 = vld [vmem:[#allocation2] sm:$0xff]
    %v841 = vld [vmem:[#allocation3] sm:$0xff]
    %s842 = smul.u32 4, 4
    %s843 = smul.addr %s842, 8
    %s844 = scalar_lea.vmem [#allocation4], %s843
    %v845 = vld [vmem:[%s844] sm:$0xff]
    %v846 = vld [vmem:[%s844 + $0x8] sm:$0xff]
    %v847 = vld [vmem:[%s844 + $0x10] sm:$0xff]
    %v848 = vld [vmem:[%s844 + $0x18] sm:$0xff]
    %849 = vmatprep.subr.mxu0 %v53
    %850 = vmatpush1.msra.mxu0 %v52
    %851 = vmatprep.subr.mxu0 %v57
    %852 = vmatpush1.msra.mxu0 %v56
    %853 = vmatprep.subr.mxu0 %v61
    %854 = vmatpush1.msra.mxu0 %v60
    %855 = vmatprep.subr.mxu0 %v65
    %856 = vmatpush1.msra.mxu0 %v64
    %857 = vmatprep.subr.mxu0 %v69
    %858 = vmatpush1.msra.mxu0 %v68
    %859 = vmatprep.subr.mxu0 %v73
    %860 = vmatpush1.msra.mxu0 %v72
    %861 = vmatprep.subr.mxu0 %v77
    %862 = vmatpush1.msra.mxu0 %v76
    %863 = vmatprep.subr.mxu0 %v81
    %864 = vmatpush1.msra.mxu0 %v80
    %865 = vmatprep.subr.mxu0 %v85
    %866 = vmatpush1.msra.mxu0 %v84
    %867 = vmatprep.subr.mxu0 %v89
    %868 = vmatpush1.msra.mxu0 %v88
    %869 = vmatprep.subr.mxu0 %v93
    %870 = vmatpush1.msra.mxu0 %v92
    %871 = vmatprep.subr.mxu0 %v97
    %872 = vmatpush1.msra.mxu0 %v96
    %873 = vmatprep.subr.mxu0 %v101
    %874 = vmatpush1.msra.mxu0 %v100
    %875 = vmatprep.subr.mxu0 %v105
    %876 = vmatpush1.msra.mxu0 %v104
    %877 = vmatprep.subr.mxu0 %v109
    %878 = vmatpush1.msra.mxu0 %v108
    %879 = vmatprep.subr.mxu0 %v113
    %880 = vmatpush1.msra.mxu0 %v112
    %881 = vmatprep.subr.mxu0 0.0
    %882 = vmatpush1.msra.mxu0 0.0
    %883 = vmatprep.subr.mxu0 0.0
    %884 = vmatpush1.msra.mxu0 0.0
    %885 = vmatprep.subr.mxu0 0.0
    %886 = vmatpush1.msra.mxu0 0.0
    %887 = vmatprep.subr.mxu0 0.0
    %888 = vmatpush1.msra.mxu0 0.0
    %889 = vmatprep.subr.mxu0 0.0
    %890 = vmatpush1.msra.mxu0 0.0
    %891 = vmatprep.subr.mxu0 0.0
    %892 = vmatpush1.msra.mxu0 0.0
    %893 = vmatprep.subr.mxu0 0.0
    %894 = vmatpush1.msra.mxu0 0.0
    %895 = vmatprep.subr.mxu0 0.0
    %896 = vmatpush1.msra.mxu0 0.0
    %897 = vmatprep.subr.mxu0 0.0
    %898 = vmatpush1.msra.mxu0 0.0
    %899 = vmatprep.subr.mxu0 0.0
    %900 = vmatpush1.msra.mxu0 0.0
    %901 = vmatprep.subr.mxu0 0.0
    %902 = vmatpush1.msra.mxu0 0.0
    %903 = vmatprep.subr.mxu0 0.0
    %904 = vmatpush1.msra.mxu0 0.0
    %905 = vmatprep.subr.mxu0 0.0
    %906 = vmatpush1.msra.mxu0 0.0
    %907 = vmatprep.subr.mxu0 0.0
    %908 = vmatpush1.msra.mxu0 0.0
    %909 = vmatprep.subr.mxu0 0.0
    %910 = vmatpush1.msra.mxu0 0.0
    %911 = vmatprep.subr.mxu0 0.0
    %912 = vmatpush1.msra.mxu0 0.0
    %913 = vmatprep.mubr.f32.mxu0 0.0
    %914 = vmatmul.mubr.f32.gmra.mrb[0].mxu0 %v840
    %v915 = vpop.f32.mrb[0].mxu0
    %v916 = vadd.f32 0.0, %v915
    %v917 = vpop.f32.mrb[0].mxu0
    %v918 = vadd.f32 0.0, %v917
    %919 = vdwg.mxu0
    %920 = vmatprep.subr.mxu0 %v55
    %921 = vmatpush1.msra.mxu0 %v54
    %922 = vmatprep.subr.mxu0 %v59
    %923 = vmatpush1.msra.mxu0 %v58
    %924 = vmatprep.subr.mxu0 %v63
    %925 = vmatpush1.msra.mxu0 %v62
    %926 = vmatprep.subr.mxu0 %v67
    %927 = vmatpush1.msra.mxu0 %v66
    %928 = vmatprep.subr.mxu0 %v71
    %929 = vmatpush1.msra.mxu0 %v70
    %930 = vmatprep.subr.mxu0 %v75
    %931 = vmatpush1.msra.mxu0 %v74
    %932 = vmatprep.subr.mxu0 %v79
    %933 = vmatpush1.msra.mxu0 %v78
    %934 = vmatprep.subr.mxu0 %v83
    %935 = vmatpush1.msra.mxu0 %v82
    %936 = vmatprep.subr.mxu0 %v87
    %937 = vmatpush1.msra.mxu0 %v86
    %938 = vmatprep.subr.mxu0 %v91
    %939 = vmatpush1.msra.mxu0 %v90
    %940 = vmatprep.subr.mxu0 %v95
    %941 = vmatpush1.msra.mxu0 %v94
    %942 = vmatprep.subr.mxu0 %v99
    %943 = vmatpush1.msra.mxu0 %v98
    %944 = vmatprep.subr.mxu0 %v103
    %945 = vmatpush1.msra.mxu0 %v102
    %946 = vmatprep.subr.mxu0 %v107
    %947 = vmatpush1.msra.mxu0 %v106
    %948 = vmatprep.subr.mxu0 %v111
    %949 = vmatpush1.msra.mxu0 %v110
    %950 = vmatprep.subr.mxu0 %v115
    %951 = vmatpush1.msra.mxu0 %v114
    %952 = vmatprep.subr.mxu0 0.0
    %953 = vmatpush1.msra.mxu0 0.0
    %954 = vmatprep.subr.mxu0 0.0
    %955 = vmatpush1.msra.mxu0 0.0
    %956 = vmatprep.subr.mxu0 0.0
    %957 = vmatpush1.msra.mxu0 0.0
    %958 = vmatprep.subr.mxu0 0.0
    %959 = vmatpush1.msra.mxu0 0.0
    %960 = vmatprep.subr.mxu0 0.0
    %961 = vmatpush1.msra.mxu0 0.0
    %962 = vmatprep.subr.mxu0 0.0
    %963 = vmatpush1.msra.mxu0 0.0
    %964 = vmatprep.subr.mxu0 0.0
    %965 = vmatpush1.msra.mxu0 0.0
    %966 = vmatprep.subr.mxu0 0.0
    %967 = vmatpush1.msra.mxu0 0.0
    %968 = vmatprep.subr.mxu0 0.0
    %969 = vmatpush1.msra.mxu0 0.0
    %970 = vmatprep.subr.mxu0 0.0
    %971 = vmatpush1.msra.mxu0 0.0
    %972 = vmatprep.subr.mxu0 0.0
    %973 = vmatpush1.msra.mxu0 0.0
    %974 = vmatprep.subr.mxu0 0.0
    %975 = vmatpush1.msra.mxu0 0.0
    %976 = vmatprep.subr.mxu0 0.0
    %977 = vmatpush1.msra.mxu0 0.0
    %978 = vmatprep.subr.mxu0 0.0
    %979 = vmatpush1.msra.mxu0 0.0
    %980 = vmatprep.subr.mxu0 0.0
    %981 = vmatpush1.msra.mxu0 0.0
    %982 = vmatprep.subr.mxu0 0.0
    %983 = vmatpush1.msra.mxu0 0.0
    %984 = vmatprep.mubr.f32.mxu0 0.0
    %985 = vmatmul.mubr.f32.gmra.mrb[0].mxu0 %v840
    %v986 = vpop.f32.mrb[0].mxu0
    %v987 = vadd.f32 0.0, %v986
    %v988 = vpop.f32.mrb[0].mxu0
    %v989 = vadd.f32 0.0, %v988
    %990 = vdwg.mxu0
    %v991 = vadd.f32 %v845, %v916
    %v992 = vadd.f32 %v846, %v918
    %v993 = vadd.f32 %v847, %v987
    %v994 = vadd.f32 %v848, %v989
    %v995 = vxor.u32 %v991, 2147483648
    %v996 = vxor.u32 %v992, 2147483648
    %v997 = vxor.u32 %v993, 2147483648
    %v998 = vmul.f32 %v995, 1.442695
    %v999 = vpow.pop %v998
    %v1000 = vmul.f32 %v996, 1.442695
    %v1001 = vpow.pop %v1000
    %v1002 = vmul.f32 %v997, 1.442695
    %v1003 = vpow.pop %v1002
    %v1004 = vadd.f32 %v999, 1.0
    %v1005 = vadd.f32 %v1001, 1.0
    %v1006 = vadd.f32 %v1003, 1.0
    %v1007 = vrcp.pop %v1004
    %v1008 = vmul.f32 1.0, %v1007
    %v1009 = vrcp.pop %v1005
    %v1010 = vmul.f32 1.0, %v1009
    %v1011 = vrcp.pop %v1006
    %v1012 = vmul.f32 1.0, %v1011
    %v1013 = vtanh.pop %v994
    %v1014 = vmul.f32 %v1010, %v841
    %v1015 = vmul.f32 %v1008, %v1013
    %v1016 = vadd.f32 %v1014, %v1015
    %v1017 = vtanh.pop %v1016
    %v1018 = vmul.f32 %v1012, %v1017
    %1019 = vst [vmem:[#allocation2] sm:$0xff] %v1018
    %1020 = vst [vmem:[#allocation3] sm:$0xff] %v1016
    %v1021 = vld [vmem:[#allocation2] sm:$0xff]
    %v1022 = vld [vmem:[#allocation3] sm:$0xff]
    %s1023 = smul.u32 5, 4
    %s1024 = smul.addr %s1023, 8
    %s1025 = scalar_lea.vmem [#allocation4], %s1024
    %v1026 = vld [vmem:[%s1025] sm:$0xff]
    %v1027 = vld [vmem:[%s1025 + $0x8] sm:$0xff]
    %v1028 = vld [vmem:[%s1025 + $0x10] sm:$0xff]
    %v1029 = vld [vmem:[%s1025 + $0x18] sm:$0xff]
    %1030 = vmatprep.subr.mxu0 %v53
    %1031 = vmatpush1.msra.mxu0 %v52
    %1032 = vmatprep.subr.mxu0 %v57
    %1033 = vmatpush1.msra.mxu0 %v56
    %1034 = vmatprep.subr.mxu0 %v61
    %1035 = vmatpush1.msra.mxu0 %v60
    %1036 = vmatprep.subr.mxu0 %v65
    %1037 = vmatpush1.msra.mxu0 %v64
    %1038 = vmatprep.subr.mxu0 %v69
    %1039 = vmatpush1.msra.mxu0 %v68
    %1040 = vmatprep.subr.mxu0 %v73
    %1041 = vmatpush1.msra.mxu0 %v72
    %1042 = vmatprep.subr.mxu0 %v77
    %1043 = vmatpush1.msra.mxu0 %v76
    %1044 = vmatprep.subr.mxu0 %v81
    %1045 = vmatpush1.msra.mxu0 %v80
    %1046 = vmatprep.subr.mxu0 %v85
    %1047 = vmatpush1.msra.mxu0 %v84
    %1048 = vmatprep.subr.mxu0 %v89
    %1049 = vmatpush1.msra.mxu0 %v88
    %1050 = vmatprep.subr.mxu0 %v93
    %1051 = vmatpush1.msra.mxu0 %v92
    %1052 = vmatprep.subr.mxu0 %v97
    %1053 = vmatpush1.msra.mxu0 %v96
    %1054 = vmatprep.subr.mxu0 %v101
    %1055 = vmatpush1.msra.mxu0 %v100
    %1056 = vmatprep.subr.mxu0 %v105
    %1057 = vmatpush1.msra.mxu0 %v104
    %1058 = vmatprep.subr.mxu0 %v109
    %1059 = vmatpush1.msra.mxu0 %v108
    %1060 = vmatprep.subr.mxu0 %v113
    %1061 = vmatpush1.msra.mxu0 %v112
    %1062 = vmatprep.subr.mxu0 0.0
    %1063 = vmatpush1.msra.mxu0 0.0
    %1064 = vmatprep.subr.mxu0 0.0
    %1065 = vmatpush1.msra.mxu0 0.0
    %1066 = vmatprep.subr.mxu0 0.0
    %1067 = vmatpush1.msra.mxu0 0.0
    %1068 = vmatprep.subr.mxu0 0.0
    %1069 = vmatpush1.msra.mxu0 0.0
    %1070 = vmatprep.subr.mxu0 0.0
    %1071 = vmatpush1.msra.mxu0 0.0
    %1072 = vmatprep.subr.mxu0 0.0
    %1073 = vmatpush1.msra.mxu0 0.0
    %1074 = vmatprep.subr.mxu0 0.0
    %1075 = vmatpush1.msra.mxu0 0.0
    %1076 = vmatprep.subr.mxu0 0.0
    %1077 = vmatpush1.msra.mxu0 0.0
    %1078 = vmatprep.subr.mxu0 0.0
    %1079 = vmatpush1.msra.mxu0 0.0
    %1080 = vmatprep.subr.mxu0 0.0
    %1081 = vmatpush1.msra.mxu0 0.0
    %1082 = vmatprep.subr.mxu0 0.0
    %1083 = vmatpush1.msra.mxu0 0.0
    %1084 = vmatprep.subr.mxu0 0.0
    %1085 = vmatpush1.msra.mxu0 0.0
    %1086 = vmatprep.subr.mxu0 0.0
    %1087 = vmatpush1.msra.mxu0 0.0
    %1088 = vmatprep.subr.mxu0 0.0
    %1089 = vmatpush1.msra.mxu0 0.0
    %1090 = vmatprep.subr.mxu0 0.0
    %1091 = vmatpush1.msra.mxu0 0.0
    %1092 = vmatprep.subr.mxu0 0.0
    %1093 = vmatpush1.msra.mxu0 0.0
    %1094 = vmatprep.mubr.f32.mxu0 0.0
    %1095 = vmatmul.mubr.f32.gmra.mrb[0].mxu0 %v1021
    %v1096 = vpop.f32.mrb[0].mxu0
    %v1097 = vadd.f32 0.0, %v1096
    %v1098 = vpop.f32.mrb[0].mxu0
    %v1099 = vadd.f32 0.0, %v1098
    %1100 = vdwg.mxu0
    %1101 = vmatprep.subr.mxu0 %v55
    %1102 = vmatpush1.msra.mxu0 %v54
    %1103 = vmatprep.subr.mxu0 %v59
    %1104 = vmatpush1.msra.mxu0 %v58
    %1105 = vmatprep.subr.mxu0 %v63
    %1106 = vmatpush1.msra.mxu0 %v62
    %1107 = vmatprep.subr.mxu0 %v67
    %1108 = vmatpush1.msra.mxu0 %v66
    %1109 = vmatprep.subr.mxu0 %v71
    %1110 = vmatpush1.msra.mxu0 %v70
    %1111 = vmatprep.subr.mxu0 %v75
    %1112 = vmatpush1.msra.mxu0 %v74
    %1113 = vmatprep.subr.mxu0 %v79
    %1114 = vmatpush1.msra.mxu0 %v78
    %1115 = vmatprep.subr.mxu0 %v83
    %1116 = vmatpush1.msra.mxu0 %v82
    %1117 = vmatprep.subr.mxu0 %v87
    %1118 = vmatpush1.msra.mxu0 %v86
    %1119 = vmatprep.subr.mxu0 %v91
    %1120 = vmatpush1.msra.mxu0 %v90
    %1121 = vmatprep.subr.mxu0 %v95
    %1122 = vmatpush1.msra.mxu0 %v94
    %1123 = vmatprep.subr.mxu0 %v99
    %1124 = vmatpush1.msra.mxu0 %v98
    %1125 = vmatprep.subr.mxu0 %v103
    %1126 = vmatpush1.msra.mxu0 %v102
    %1127 = vmatprep.subr.mxu0 %v107
    %1128 = vmatpush1.msra.mxu0 %v106
    %1129 = vmatprep.subr.mxu0 %v111
    %1130 = vmatpush1.msra.mxu0 %v110
    %1131 = vmatprep.subr.mxu0 %v115
    %1132 = vmatpush1.msra.mxu0 %v114
    %1133 = vmatprep.subr.mxu0 0.0
    %1134 = vmatpush1.msra.mxu0 0.0
    %1135 = vmatprep.subr.mxu0 0.0
    %1136 = vmatpush1.msra.mxu0 0.0
    %1137 = vmatprep.subr.mxu0 0.0
    %1138 = vmatpush1.msra.mxu0 0.0
    %1139 = vmatprep.subr.mxu0 0.0
    %1140 = vmatpush1.msra.mxu0 0.0
    %1141 = vmatprep.subr.mxu0 0.0
    %1142 = vmatpush1.msra.mxu0 0.0
    %1143 = vmatprep.subr.mxu0 0.0
    %1144 = vmatpush1.msra.mxu0 0.0
    %1145 = vmatprep.subr.mxu0 0.0
    %1146 = vmatpush1.msra.mxu0 0.0
    %1147 = vmatprep.subr.mxu0 0.0
    %1148 = vmatpush1.msra.mxu0 0.0
    %1149 = vmatprep.subr.mxu0 0.0
    %1150 = vmatpush1.msra.mxu0 0.0
    %1151 = vmatprep.subr.mxu0 0.0
    %1152 = vmatpush1.msra.mxu0 0.0
    %1153 = vmatprep.subr.mxu0 0.0
    %1154 = vmatpush1.msra.mxu0 0.0
    %1155 = vmatprep.subr.mxu0 0.0
    %1156 = vmatpush1.msra.mxu0 0.0
    %1157 = vmatprep.subr.mxu0 0.0
    %1158 = vmatpush1.msra.mxu0 0.0
    %1159 = vmatprep.subr.mxu0 0.0
    %1160 = vmatpush1.msra.mxu0 0.0
    %1161 = vmatprep.subr.mxu0 0.0
    %1162 = vmatpush1.msra.mxu0 0.0
    %1163 = vmatprep.subr.mxu0 0.0
    %1164 = vmatpush1.msra.mxu0 0.0
    %1165 = vmatprep.mubr.f32.mxu0 0.0
    %1166 = vmatmul.mubr.f32.gmra.mrb[0].mxu0 %v1021
    %v1167 = vpop.f32.mrb[0].mxu0
    %v1168 = vadd.f32 0.0, %v1167
    %v1169 = vpop.f32.mrb[0].mxu0
    %v1170 = vadd.f32 0.0, %v1169
    %1171 = vdwg.mxu0
    %v1172 = vadd.f32 %v1026, %v1097
    %v1173 = vadd.f32 %v1027, %v1099
    %v1174 = vadd.f32 %v1028, %v1168
    %v1175 = vadd.f32 %v1029, %v1170
    %v1176 = vxor.u32 %v1172, 2147483648
    %v1177 = vxor.u32 %v1173, 2147483648
    %v1178 = vxor.u32 %v1174, 2147483648
    %v1179 = vmul.f32 %v1176, 1.442695
    %v1180 = vpow.pop %v1179
    %v1181 = vmul.f32 %v1177, 1.442695
    %v1182 = vpow.pop %v1181
    %v1183 = vmul.f32 %v1178, 1.442695
    %v1184 = vpow.pop %v1183
    %v1185 = vadd.f32 %v1180, 1.0
    %v1186 = vadd.f32 %v1182, 1.0
    %v1187 = vadd.f32 %v1184, 1.0
    %v1188 = vrcp.pop %v1185
    %v1189 = vmul.f32 1.0, %v1188
    %v1190 = vrcp.pop %v1186
    %v1191 = vmul.f32 1.0, %v1190
    %v1192 = vrcp.pop %v1187
    %v1193 = vmul.f32 1.0, %v1192
    %v1194 = vtanh.pop %v1175
    %v1195 = vmul.f32 %v1191, %v1022
    %v1196 = vmul.f32 %v1189, %v1194
    %v1197 = vadd.f32 %v1195, %v1196
    %v1198 = vtanh.pop %v1197
    %v1199 = vmul.f32 %v1193, %v1198
    %1200 = vst [vmem:[#allocation2] sm:$0xff] %v1199
    %1201 = vst [vmem:[#allocation3] sm:$0xff] %v1197
    %v1202 = vld [vmem:[#allocation2] sm:$0xff]
    %v1203 = vld [vmem:[#allocation3] sm:$0xff]
    %s1204 = smul.u32 6, 4
    %s1205 = smul.addr %s1204, 8
    %s1206 = scalar_lea.vmem [#allocation4], %s1205
    %v1207 = vld [vmem:[%s1206] sm:$0xff]
    %v1208 = vld [vmem:[%s1206 + $0x8] sm:$0xff]
    %v1209 = vld [vmem:[%s1206 + $0x10] sm:$0xff]
    %v1210 = vld [vmem:[%s1206 + $0x18] sm:$0xff]
    %1211 = vmatprep.subr.mxu0 %v53
    %1212 = vmatpush1.msra.mxu0 %v52
    %1213 = vmatprep.subr.mxu0 %v57
    %1214 = vmatpush1.msra.mxu0 %v56
    %1215 = vmatprep.subr.mxu0 %v61
    %1216 = vmatpush1.msra.mxu0 %v60
    %1217 = vmatprep.subr.mxu0 %v65
    %1218 = vmatpush1.msra.mxu0 %v64
    %1219 = vmatprep.subr.mxu0 %v69
    %1220 = vmatpush1.msra.mxu0 %v68
    %1221 = vmatprep.subr.mxu0 %v73
    %1222 = vmatpush1.msra.mxu0 %v72
    %1223 = vmatprep.subr.mxu0 %v77
    %1224 = vmatpush1.msra.mxu0 %v76
    %1225 = vmatprep.subr.mxu0 %v81
    %1226 = vmatpush1.msra.mxu0 %v80
    %1227 = vmatprep.subr.mxu0 %v85
    %1228 = vmatpush1.msra.mxu0 %v84
    %1229 = vmatprep.subr.mxu0 %v89
    %1230 = vmatpush1.msra.mxu0 %v88
    %1231 = vmatprep.subr.mxu0 %v93
    %1232 = vmatpush1.msra.mxu0 %v92
    %1233 = vmatprep.subr.mxu0 %v97
    %1234 = vmatpush1.msra.mxu0 %v96
    %1235 = vmatprep.subr.mxu0 %v101
    %1236 = vmatpush1.msra.mxu0 %v100
    %1237 = vmatprep.subr.mxu0 %v105
    %1238 = vmatpush1.msra.mxu0 %v104
    %1239 = vmatprep.subr.mxu0 %v109
    %1240 = vmatpush1.msra.mxu0 %v108
    %1241 = vmatprep.subr.mxu0 %v113
    %1242 = vmatpush1.msra.mxu0 %v112
    %1243 = vmatprep.subr.mxu0 0.0
    %1244 = vmatpush1.msra.mxu0 0.0
    %1245 = vmatprep.subr.mxu0 0.0
    %1246 = vmatpush1.msra.mxu0 0.0
    %1247 = vmatprep.subr.mxu0 0.0
    %1248 = vmatpush1.msra.mxu0 0.0
    %1249 = vmatprep.subr.mxu0 0.0
    %1250 = vmatpush1.msra.mxu0 0.0
    %1251 = vmatprep.subr.mxu0 0.0
    %1252 = vmatpush1.msra.mxu0 0.0
    %1253 = vmatprep.subr.mxu0 0.0
    %1254 = vmatpush1.msra.mxu0 0.0
    %1255 = vmatprep.subr.mxu0 0.0
    %1256 = vmatpush1.msra.mxu0 0.0
    %1257 = vmatprep.subr.mxu0 0.0
    %1258 = vmatpush1.msra.mxu0 0.0
    %1259 = vmatprep.subr.mxu0 0.0
    %1260 = vmatpush1.msra.mxu0 0.0
    %1261 = vmatprep.subr.mxu0 0.0
    %1262 = vmatpush1.msra.mxu0 0.0
    %1263 = vmatprep.subr.mxu0 0.0
    %1264 = vmatpush1.msra.mxu0 0.0
    %1265 = vmatprep.subr.mxu0 0.0
    %1266 = vmatpush1.msra.mxu0 0.0
    %1267 = vmatprep.subr.mxu0 0.0
    %1268 = vmatpush1.msra.mxu0 0.0
    %1269 = vmatprep.subr.mxu0 0.0
    %1270 = vmatpush1.msra.mxu0 0.0
    %1271 = vmatprep.subr.mxu0 0.0
    %1272 = vmatpush1.msra.mxu0 0.0
    %1273 = vmatprep.subr.mxu0 0.0
    %1274 = vmatpush1.msra.mxu0 0.0
    %1275 = vmatprep.mubr.f32.mxu0 0.0
    %1276 = vmatmul.mubr.f32.gmra.mrb[0].mxu0 %v1202
    %v1277 = vpop.f32.mrb[0].mxu0
    %v1278 = vadd.f32 0.0, %v1277
    %v1279 = vpop.f32.mrb[0].mxu0
    %v1280 = vadd.f32 0.0, %v1279
    %1281 = vdwg.mxu0
    %1282 = vmatprep.subr.mxu0 %v55
    %1283 = vmatpush1.msra.mxu0 %v54
    %1284 = vmatprep.subr.mxu0 %v59
    %1285 = vmatpush1.msra.mxu0 %v58
    %1286 = vmatprep.subr.mxu0 %v63
    %1287 = vmatpush1.msra.mxu0 %v62
    %1288 = vmatprep.subr.mxu0 %v67
    %1289 = vmatpush1.msra.mxu0 %v66
    %1290 = vmatprep.subr.mxu0 %v71
    %1291 = vmatpush1.msra.mxu0 %v70
    %1292 = vmatprep.subr.mxu0 %v75
    %1293 = vmatpush1.msra.mxu0 %v74
    %1294 = vmatprep.subr.mxu0 %v79
    %1295 = vmatpush1.msra.mxu0 %v78
    %1296 = vmatprep.subr.mxu0 %v83
    %1297 = vmatpush1.msra.mxu0 %v82
    %1298 = vmatprep.subr.mxu0 %v87
    %1299 = vmatpush1.msra.mxu0 %v86
    %1300 = vmatprep.subr.mxu0 %v91
    %1301 = vmatpush1.msra.mxu0 %v90
    %1302 = vmatprep.subr.mxu0 %v95
    %1303 = vmatpush1.msra.mxu0 %v94
    %1304 = vmatprep.subr.mxu0 %v99
    %1305 = vmatpush1.msra.mxu0 %v98
    %1306 = vmatprep.subr.mxu0 %v103
    %1307 = vmatpush1.msra.mxu0 %v102
    %1308 = vmatprep.subr.mxu0 %v107
    %1309 = vmatpush1.msra.mxu0 %v106
    %1310 = vmatprep.subr.mxu0 %v111
    %1311 = vmatpush1.msra.mxu0 %v110
    %1312 = vmatprep.subr.mxu0 %v115
    %1313 = vmatpush1.msra.mxu0 %v114
    %1314 = vmatprep.subr.mxu0 0.0
    %1315 = vmatpush1.msra.mxu0 0.0
    %1316 = vmatprep.subr.mxu0 0.0
    %1317 = vmatpush1.msra.mxu0 0.0
    %1318 = vmatprep.subr.mxu0 0.0
    %1319 = vmatpush1.msra.mxu0 0.0
    %1320 = vmatprep.subr.mxu0 0.0
    %1321 = vmatpush1.msra.mxu0 0.0
    %1322 = vmatprep.subr.mxu0 0.0
    %1323 = vmatpush1.msra.mxu0 0.0
    %1324 = vmatprep.subr.mxu0 0.0
    %1325 = vmatpush1.msra.mxu0 0.0
    %1326 = vmatprep.subr.mxu0 0.0
    %1327 = vmatpush1.msra.mxu0 0.0
    %1328 = vmatprep.subr.mxu0 0.0
    %1329 = vmatpush1.msra.mxu0 0.0
    %1330 = vmatprep.subr.mxu0 0.0
    %1331 = vmatpush1.msra.mxu0 0.0
    %1332 = vmatprep.subr.mxu0 0.0
    %1333 = vmatpush1.msra.mxu0 0.0
    %1334 = vmatprep.subr.mxu0 0.0
    %1335 = vmatpush1.msra.mxu0 0.0
    %1336 = vmatprep.subr.mxu0 0.0
    %1337 = vmatpush1.msra.mxu0 0.0
    %1338 = vmatprep.subr.mxu0 0.0
    %1339 = vmatpush1.msra.mxu0 0.0
    %1340 = vmatprep.subr.mxu0 0.0
    %1341 = vmatpush1.msra.mxu0 0.0
    %1342 = vmatprep.subr.mxu0 0.0
    %1343 = vmatpush1.msra.mxu0 0.0
    %1344 = vmatprep.subr.mxu0 0.0
    %1345 = vmatpush1.msra.mxu0 0.0
    %1346 = vmatprep.mubr.f32.mxu0 0.0
    %1347 = vmatmul.mubr.f32.gmra.mrb[0].mxu0 %v1202
    %v1348 = vpop.f32.mrb[0].mxu0
    %v1349 = vadd.f32 0.0, %v1348
    %v1350 = vpop.f32.mrb[0].mxu0
    %v1351 = vadd.f32 0.0, %v1350
    %1352 = vdwg.mxu0
    %v1353 = vadd.f32 %v1207, %v1278
    %v1354 = vadd.f32 %v1208, %v1280
    %v1355 = vadd.f32 %v1209, %v1349
    %v1356 = vadd.f32 %v1210, %v1351
    %v1357 = vxor.u32 %v1353, 2147483648
    %v1358 = vxor.u32 %v1354, 2147483648
    %v1359 = vxor.u32 %v1355, 2147483648
    %v1360 = vmul.f32 %v1357, 1.442695
    %v1361 = vpow.pop %v1360
    %v1362 = vmul.f32 %v1358, 1.442695
    %v1363 = vpow.pop %v1362
    %v1364 = vmul.f32 %v1359, 1.442695
    %v1365 = vpow.pop %v1364
    %v1366 = vadd.f32 %v1361, 1.0
    %v1367 = vadd.f32 %v1363, 1.0
    %v1368 = vadd.f32 %v1365, 1.0
    %v1369 = vrcp.pop %v1366
    %v1370 = vmul.f32 1.0, %v1369
    %v1371 = vrcp.pop %v1367
    %v1372 = vmul.f32 1.0, %v1371
    %v1373 = vrcp.pop %v1368
    %v1374 = vmul.f32 1.0, %v1373
    %v1375 = vtanh.pop %v1356
    %v1376 = vmul.f32 %v1372, %v1203
    %v1377 = vmul.f32 %v1370, %v1375
    %v1378 = vadd.f32 %v1376, %v1377
    %v1379 = vtanh.pop %v1378
    %v1380 = vmul.f32 %v1374, %v1379
    %1381 = vst [vmem:[#allocation2] sm:$0xff] %v1380
    %1382 = vst [vmem:[#allocation3] sm:$0xff] %v1378
    %v1383 = vld [vmem:[#allocation2] sm:$0xff]
    %v1384 = vld [vmem:[#allocation3] sm:$0xff]
    %s1385 = smul.u32 7, 4
    %s1386 = smul.addr %s1385, 8
    %s1387 = scalar_lea.vmem [#allocation4], %s1386
    %v1388 = vld [vmem:[%s1387] sm:$0xff]
    %v1389 = vld [vmem:[%s1387 + $0x8] sm:$0xff]
    %v1390 = vld [vmem:[%s1387 + $0x10] sm:$0xff]
    %v1391 = vld [vmem:[%s1387 + $0x18] sm:$0xff]
    %1392 = vmatprep.subr.mxu0 %v53
    %1393 = vmatpush1.msra.mxu0 %v52
    %1394 = vmatprep.subr.mxu0 %v57
    %1395 = vmatpush1.msra.mxu0 %v56
    %1396 = vmatprep.subr.mxu0 %v61
    %1397 = vmatpush1.msra.mxu0 %v60
    %1398 = vmatprep.subr.mxu0 %v65
    %1399 = vmatpush1.msra.mxu0 %v64
    %1400 = vmatprep.subr.mxu0 %v69
    %1401 = vmatpush1.msra.mxu0 %v68
    %1402 = vmatprep.subr.mxu0 %v73
    %1403 = vmatpush1.msra.mxu0 %v72
    %1404 = vmatprep.subr.mxu0 %v77
    %1405 = vmatpush1.msra.mxu0 %v76
    %1406 = vmatprep.subr.mxu0 %v81
    %1407 = vmatpush1.msra.mxu0 %v80
    %1408 = vmatprep.subr.mxu0 %v85
    %1409 = vmatpush1.msra.mxu0 %v84
    %1410 = vmatprep.subr.mxu0 %v89
    %1411 = vmatpush1.msra.mxu0 %v88
    %1412 = vmatprep.subr.mxu0 %v93
    %1413 = vmatpush1.msra.mxu0 %v92
    %1414 = vmatprep.subr.mxu0 %v97
    %1415 = vmatpush1.msra.mxu0 %v96
    %1416 = vmatprep.subr.mxu0 %v101
    %1417 = vmatpush1.msra.mxu0 %v100
    %1418 = vmatprep.subr.mxu0 %v105
    %1419 = vmatpush1.msra.mxu0 %v104
    %1420 = vmatprep.subr.mxu0 %v109
    %1421 = vmatpush1.msra.mxu0 %v108
    %1422 = vmatprep.subr.mxu0 %v113
    %1423 = vmatpush1.msra.mxu0 %v112
    %1424 = vmatprep.subr.mxu0 0.0
    %1425 = vmatpush1.msra.mxu0 0.0
    %1426 = vmatprep.subr.mxu0 0.0
    %1427 = vmatpush1.msra.mxu0 0.0
    %1428 = vmatprep.subr.mxu0 0.0
    %1429 = vmatpush1.msra.mxu0 0.0
    %1430 = vmatprep.subr.mxu0 0.0
    %1431 = vmatpush1.msra.mxu0 0.0
    %1432 = vmatprep.subr.mxu0 0.0
    %1433 = vmatpush1.msra.mxu0 0.0
    %1434 = vmatprep.subr.mxu0 0.0
    %1435 = vmatpush1.msra.mxu0 0.0
    %1436 = vmatprep.subr.mxu0 0.0
    %1437 = vmatpush1.msra.mxu0 0.0
    %1438 = vmatprep.subr.mxu0 0.0
    %1439 = vmatpush1.msra.mxu0 0.0
    %1440 = vmatprep.subr.mxu0 0.0
    %1441 = vmatpush1.msra.mxu0 0.0
    %1442 = vmatprep.subr.mxu0 0.0
    %1443 = vmatpush1.msra.mxu0 0.0
    %1444 = vmatprep.subr.mxu0 0.0
    %1445 = vmatpush1.msra.mxu0 0.0
    %1446 = vmatprep.subr.mxu0 0.0
    %1447 = vmatpush1.msra.mxu0 0.0
    %1448 = vmatprep.subr.mxu0 0.0
    %1449 = vmatpush1.msra.mxu0 0.0
    %1450 = vmatprep.subr.mxu0 0.0
    %1451 = vmatpush1.msra.mxu0 0.0
    %1452 = vmatprep.subr.mxu0 0.0
    %1453 = vmatpush1.msra.mxu0 0.0
    %1454 = vmatprep.subr.mxu0 0.0
    %1455 = vmatpush1.msra.mxu0 0.0
    %1456 = vmatprep.mubr.f32.mxu0 0.0
    %1457 = vmatmul.mubr.f32.gmra.mrb[0].mxu0 %v1383
    %v1458 = vpop.f32.mrb[0].mxu0
    %v1459 = vadd.f32 0.0, %v1458
    %v1460 = vpop.f32.mrb[0].mxu0
    %v1461 = vadd.f32 0.0, %v1460
    %1462 = vdwg.mxu0
    %1463 = vmatprep.subr.mxu0 %v55
    %1464 = vmatpush1.msra.mxu0 %v54
    %1465 = vmatprep.subr.mxu0 %v59
    %1466 = vmatpush1.msra.mxu0 %v58
    %1467 = vmatprep.subr.mxu0 %v63
    %1468 = vmatpush1.msra.mxu0 %v62
    %1469 = vmatprep.subr.mxu0 %v67
    %1470 = vmatpush1.msra.mxu0 %v66
    %1471 = vmatprep.subr.mxu0 %v71
    %1472 = vmatpush1.msra.mxu0 %v70
    %1473 = vmatprep.subr.mxu0 %v75
    %1474 = vmatpush1.msra.mxu0 %v74
    %1475 = vmatprep.subr.mxu0 %v79
    %1476 = vmatpush1.msra.mxu0 %v78
    %1477 = vmatprep.subr.mxu0 %v83
    %1478 = vmatpush1.msra.mxu0 %v82
    %1479 = vmatprep.subr.mxu0 %v87
    %1480 = vmatpush1.msra.mxu0 %v86
    %1481 = vmatprep.subr.mxu0 %v91
    %1482 = vmatpush1.msra.mxu0 %v90
    %1483 = vmatprep.subr.mxu0 %v95
    %1484 = vmatpush1.msra.mxu0 %v94
    %1485 = vmatprep.subr.mxu0 %v99
    %1486 = vmatpush1.msra.mxu0 %v98
    %1487 = vmatprep.subr.mxu0 %v103
    %1488 = vmatpush1.msra.mxu0 %v102
    %1489 = vmatprep.subr.mxu0 %v107
    %1490 = vmatpush1.msra.mxu0 %v106
    %1491 = vmatprep.subr.mxu0 %v111
    %1492 = vmatpush1.msra.mxu0 %v110
    %1493 = vmatprep.subr.mxu0 %v115
    %1494 = vmatpush1.msra.mxu0 %v114
    %1495 = vmatprep.subr.mxu0 0.0
    %1496 = vmatpush1.msra.mxu0 0.0
    %1497 = vmatprep.subr.mxu0 0.0
    %1498 = vmatpush1.msra.mxu0 0.0
    %1499 = vmatprep.subr.mxu0 0.0
    %1500 = vmatpush1.msra.mxu0 0.0
    %1501 = vmatprep.subr.mxu0 0.0
    %1502 = vmatpush1.msra.mxu0 0.0
    %1503 = vmatprep.subr.mxu0 0.0
    %1504 = vmatpush1.msra.mxu0 0.0
    %1505 = vmatprep.subr.mxu0 0.0
    %1506 = vmatpush1.msra.mxu0 0.0
    %1507 = vmatprep.subr.mxu0 0.0
    %1508 = vmatpush1.msra.mxu0 0.0
    %1509 = vmatprep.subr.mxu0 0.0
    %1510 = vmatpush1.msra.mxu0 0.0
    %1511 = vmatprep.subr.mxu0 0.0
    %1512 = vmatpush1.msra.mxu0 0.0
    %1513 = vmatprep.subr.mxu0 0.0
    %1514 = vmatpush1.msra.mxu0 0.0
    %1515 = vmatprep.subr.mxu0 0.0
    %1516 = vmatpush1.msra.mxu0 0.0
    %1517 = vmatprep.subr.mxu0 0.0
    %1518 = vmatpush1.msra.mxu0 0.0
    %1519 = vmatprep.subr.mxu0 0.0
    %1520 = vmatpush1.msra.mxu0 0.0
    %1521 = vmatprep.subr.mxu0 0.0
    %1522 = vmatpush1.msra.mxu0 0.0
    %1523 = vmatprep.subr.mxu0 0.0
    %1524 = vmatpush1.msra.mxu0 0.0
    %1525 = vmatprep.subr.mxu0 0.0
    %1526 = vmatpush1.msra.mxu0 0.0
    %1527 = vmatprep.mubr.f32.mxu0 0.0
    %1528 = vmatmul.mubr.f32.gmra.mrb[0].mxu0 %v1383
    %v1529 = vpop.f32.mrb[0].mxu0
    %v1530 = vadd.f32 0.0, %v1529
    %v1531 = vpop.f32.mrb[0].mxu0
    %v1532 = vadd.f32 0.0, %v1531
    %1533 = vdwg.mxu0
    %v1534 = vadd.f32 %v1388, %v1459
    %v1535 = vadd.f32 %v1389, %v1461
    %v1536 = vadd.f32 %v1390, %v1530
    %v1537 = vadd.f32 %v1391, %v1532
    %v1538 = vxor.u32 %v1534, 2147483648
    %v1539 = vxor.u32 %v1535, 2147483648
    %v1540 = vxor.u32 %v1536, 2147483648
    %v1541 = vmul.f32 %v1538, 1.442695
    %v1542 = vpow.pop %v1541
    %v1543 = vmul.f32 %v1539, 1.442695
    %v1544 = vpow.pop %v1543
    %v1545 = vmul.f32 %v1540, 1.442695
    %v1546 = vpow.pop %v1545
    %v1547 = vadd.f32 %v1542, 1.0
    %v1548 = vadd.f32 %v1544, 1.0
    %v1549 = vadd.f32 %v1546, 1.0
    %v1550 = vrcp.pop %v1547
    %v1551 = vmul.f32 1.0, %v1550
    %v1552 = vrcp.pop %v1548
    %v1553 = vmul.f32 1.0, %v1552
    %v1554 = vrcp.pop %v1549
    %v1555 = vmul.f32 1.0, %v1554
    %v1556 = vtanh.pop %v1537
    %v1557 = vmul.f32 %v1553, %v1384
    %v1558 = vmul.f32 %v1551, %v1556
    %v1559 = vadd.f32 %v1557, %v1558
    %v1560 = vtanh.pop %v1559
    %v1561 = vmul.f32 %v1555, %v1560
    %1562 = vst [vmem:[#allocation2] sm:$0xff] %v1561
    %1563 = vst [vmem:[#allocation3] sm:$0xff] %v1559
    // Predicated region
    $region30: #{tpu_custom_call.1} parent=1 // pred_check
      %p1564 = pneg %p46
    $region31: #{tpu_custom_call.1} parent=1 // pred_check_branch
      %1566 = sbr.rel (%p1564) target = $region33
    $region32: #{tpu_custom_call.1} parent=1 // pred_region
      %v1567 = vld [vmem:[#allocation2] sm:$0xff]
      %v1568 = vld [vmem:[%s2] sm:$0xff]
      %v1569 = vld [vmem:[%s2 + $0x8] sm:$0xff]
      %v1570 = vld [vmem:[%s2 + $0x10] sm:$0xff]
      %v1571 = vld [vmem:[%s2 + $0x18] sm:$0xff]
      %v1572 = vld [vmem:[%s2 + $0x20] sm:$0xff]
      %v1573 = vld [vmem:[%s2 + $0x28] sm:$0xff]
      %v1574 = vld [vmem:[%s2 + $0x30] sm:$0xff]
      %v1575 = vld [vmem:[%s2 + $0x38] sm:$0xff]
      %v1576 = vld [vmem:[%s2 + $0x40] sm:$0xff]
      %v1577 = vld [vmem:[%s2 + $0x48] sm:$0xff]
      %v1578 = vld [vmem:[%s2 + $0x50] sm:$0xff]
      %v1579 = vld [vmem:[%s2 + $0x58] sm:$0xff]
      %v1580 = vld [vmem:[%s2 + $0x60] sm:$0xff]
      %v1581 = vld [vmem:[%s2 + $0x68] sm:$0xff]
      %v1582 = vld [vmem:[%s2 + $0x70] sm:$0xff]
      %v1583 = vld [vmem:[%s2 + $0x78] sm:$0xff]
      %v1584 = vld [vmem:[%s3] sm:$0x1]
      %v1586 = vlaneseq
      %v1587 = vshrl.u32 %v1586, 7
      %v1588 = vsub.s32 0, %v1587
      %v1589 = vrot.slane %v1584, %v1588
      %1591 = vmatprep.subr.mxu0 0.0
      %1592 = vmatpush1.msra.mxu0 %v1568
      %1593 = vmatprep.subr.mxu0 0.0
      %1594 = vmatpush1.msra.mxu0 %v1569
      %1595 = vmatprep.subr.mxu0 0.0
      %1596 = vmatpush1.msra.mxu0 %v1570
      %1597 = vmatprep.subr.mxu0 0.0
      %1598 = vmatpush1.msra.mxu0 %v1571
      %1599 = vmatprep.subr.mxu0 0.0
      %1600 = vmatpush1.msra.mxu0 %v1572
      %1601 = vmatprep.subr.mxu0 0.0
      %1602 = vmatpush1.msra.mxu0 %v1573
      %1603 = vmatprep.subr.mxu0 0.0
      %1604 = vmatpush1.msra.mxu0 %v1574
      %1605 = vmatprep.subr.mxu0 0.0
      %1606 = vmatpush1.msra.mxu0 %v1575
      %1607 = vmatprep.subr.mxu0 0.0
      %1608 = vmatpush1.msra.mxu0 %v1576
      %1609 = vmatprep.subr.mxu0 0.0
      %1610 = vmatpush1.msra.mxu0 %v1577
      %1611 = vmatprep.subr.mxu0 0.0
      %1612 = vmatpush1.msra.mxu0 %v1578
      %1613 = vmatprep.subr.mxu0 0.0
      %1614 = vmatpush1.msra.mxu0 %v1579
      %1615 = vmatprep.subr.mxu0 0.0
      %1616 = vmatpush1.msra.mxu0 %v1580
      %1617 = vmatprep.subr.mxu0 0.0
      %1618 = vmatpush1.msra.mxu0 %v1581
      %1619 = vmatprep.subr.mxu0 0.0
      %1620 = vmatpush1.msra.mxu0 %v1582
      %1621 = vmatprep.subr.mxu0 0.0
      %1622 = vmatpush1.msra.mxu0 %v1583
      %1623 = vmatprep.subr.mxu0 0.0
      %1624 = vmatpush1.msra.mxu0 0.0
      %1625 = vmatprep.subr.mxu0 0.0
      %1626 = vmatpush1.msra.mxu0 0.0
      %1627 = vmatprep.subr.mxu0 0.0
      %1628 = vmatpush1.msra.mxu0 0.0
      %1629 = vmatprep.subr.mxu0 0.0
      %1630 = vmatpush1.msra.mxu0 0.0
      %1631 = vmatprep.subr.mxu0 0.0
      %1632 = vmatpush1.msra.mxu0 0.0
      %1633 = vmatprep.subr.mxu0 0.0
      %1634 = vmatpush1.msra.mxu0 0.0
      %1635 = vmatprep.subr.mxu0 0.0
      %1636 = vmatpush1.msra.mxu0 0.0
      %1637 = vmatprep.subr.mxu0 0.0
      %1638 = vmatpush1.msra.mxu0 0.0
      %1639 = vmatprep.subr.mxu0 0.0
      %1640 = vmatpush1.msra.mxu0 0.0
      %1641 = vmatprep.subr.mxu0 0.0
      %1642 = vmatpush1.msra.mxu0 0.0
      %1643 = vmatprep.subr.mxu0 0.0
      %1644 = vmatpush1.msra.mxu0 0.0
      %1645 = vmatprep.subr.mxu0 0.0
      %1646 = vmatpush1.msra.mxu0 0.0
      %1647 = vmatprep.subr.mxu0 0.0
      %1648 = vmatpush1.msra.mxu0 0.0
      %1649 = vmatprep.subr.mxu0 0.0
      %1650 = vmatpush1.msra.mxu0 0.0
      %1651 = vmatprep.subr.mxu0 0.0
      %1652 = vmatpush1.msra.mxu0 0.0
      %1653 = vmatprep.subr.mxu0 0.0
      %1654 = vmatpush1.msra.mxu0 0.0
      %1655 = vmatprep.mubr.f32.mxu0 0.0
      %1656 = vmatmul.mubr.f32.gmra.mrb[0].mxu0 %v1567
      %v1657 = vpop.f32.mrb[0].mxu0
      %v1658 = vadd.f32 %v1589, %v1657
      %v1659 = vpop.f32.mrb[0].mxu0
      %1660 = vdwg.mxu0
      %v1661 = vmax.f32 %v1658, 0.0
      %vm1662 = vcmask 162816
      %1663 = vst.msk [vmem:[#allocation9] sm:$0xff] %vm1662, %v1661
    $region33: #{tpu_custom_call.1} parent=1 // pred_fallthru
      _
    // Predicated region
    $region34: #{tpu_custom_call.1} parent=1 // pred_check
      _
    $region35: #{tpu_custom_call.1} parent=1 // pred_check_branch
      %1665 = sbr.rel (0) target = $region37
    $region36: #{tpu_custom_call.1} parent=1 // pred_region
      %s1667 = ssub.s32 128, 128
      %1668 = vsyncadd [#allocation6], %s1667
      %s1670 = sshll.u32 [#allocation9], 4
      %s1671 = int_to_ptr.vmem [resolvable:$true] %s1670
      %1673 = dma.vmem_to_hbm [thread:$0]  %s1671, 128, %s4, [#allocation6]
    $region37: #{tpu_custom_call.1} parent=1 // pred_fallthru
      _
    // Predicated region
    $region38: #{tpu_custom_call.1} parent=1 // pred_check
      _
    $region39: #{tpu_custom_call.1} parent=1 // pred_check_branch
      %1675 = sbr.rel (0) target = $region41
    $region40: #{tpu_custom_call.1} parent=1 // pred_region
      %1676 = dma.done [#allocation6], 128
    $region41: #{tpu_custom_call.1} parent=1 // pred_fallthru
      _
    %1677 = vsyncpa [#allocation5], 1
    %1678 = vsyncpa [#allocation8], 1
    %1679 = vsyncpa [#allocation6], 1

</llo_original>
